<compile_context>
chip_gen: v5e
topology: v5e:2x2
jax: 0.10.0
libtpu: 0.0.40
codegen_flags: <defaults>
</compile_context>

<pallas_src>
import inspect

import jax
import jax.numpy as jnp
from jax.experimental import pallas as pl
from jax.experimental.pallas import tpu as pltpu

LN_EPS = 1e-5

_VMEM_LIMIT_BYTES = 48 * 1024 * 1024   # explicit scoped-VMEM cap (fits v7x's 64 MiB)
_TILE_VMEM_BUDGET = 28 * 1024 * 1024   # budget used when choosing the row tile


def _patch_merging_kernel(x_even_ref, x_odd_ref, g_ref, b_ref, w_ref, o_ref):
    """Fused 2x2-merge + LayerNorm(4C) + Linear(4C -> 2C, no bias) on one tile.

    x_even_ref / x_odd_ref : (th, Wh, 2C)  even / odd input-row parity.
        Row-major flattening of (th, Wh) gives the output tokens; the even ref
        holds the [x0|x2] channel half, the odd ref holds [x1|x3].
    g_ref, b_ref : (2, 1, 2C) f32  LayerNorm gamma/beta split the same way.
    w_ref        : (2, 2C, 2Cp)    reduction weight, halves pre-split/permuted.
    o_ref        : (th*Wh, 2Cp)    output tile.
    """
    th, wh, two_c = x_even_ref.shape
    tm = th * wh
    inv_four_c = 1.0 / (2 * two_c)

    ev = x_even_ref[...].reshape(tm, two_c).astype(jnp.float32)
    od = x_odd_ref[...].reshape(tm, two_c).astype(jnp.float32)

    # LayerNorm statistics over the full 4C feature (both halves), in f32.
    mean = (jnp.sum(ev, axis=-1, keepdims=True)
            + jnp.sum(od, axis=-1, keepdims=True)) * inv_four_c
    evc = ev - mean
    odc = od - mean
    var = (jnp.sum(evc * evc, axis=-1, keepdims=True)
           + jnp.sum(odc * odc, axis=-1, keepdims=True)) * inv_four_c
    inv = jax.lax.rsqrt(var + LN_EPS)

    mm_dtype = w_ref.dtype
    ev_n = (evc * inv * g_ref[0] + b_ref[0]).astype(mm_dtype)
    od_n = (odc * inv * g_ref[1] + b_ref[1]).astype(mm_dtype)

    acc = jnp.dot(ev_n, w_ref[0], preferred_element_type=jnp.float32)
    acc = acc + jnp.dot(od_n, w_ref[1], preferred_element_type=jnp.float32)
    o_ref[...] = acc.astype(o_ref.dtype)


def _supports_single_buffering():
    if not hasattr(pl, "Buffered"):
        return False
    try:
        return "pipeline_mode" in inspect.signature(pl.BlockSpec).parameters
    except (TypeError, ValueError):
        return False


def _split_params(gamma, beta, weight, c, two_c_pad, mm_dtype):
    """Permute/split LN params + weight into the kernel's [x0|x2]/[x1|x3] layout."""
    two_c = 2 * c
    g4 = gamma.reshape(4, c)
    b4 = beta.reshape(4, c)
    g2 = jnp.stack([jnp.concatenate([g4[0], g4[2]]),
                    jnp.concatenate([g4[1], g4[3]])]).astype(jnp.float32)
    b2 = jnp.stack([jnp.concatenate([b4[0], b4[2]]),
                    jnp.concatenate([b4[1], b4[3]])]).astype(jnp.float32)
    g2 = g2.reshape(2, 1, two_c)
    b2 = b2.reshape(2, 1, two_c)

    w_t = weight.T.reshape(4, c, two_c)                   # blocks of the 4C input dim
    w_even = jnp.concatenate([w_t[0], w_t[2]], axis=0)    # (2C, 2C) for [x0|x2]
    w_odd = jnp.concatenate([w_t[1], w_t[3]], axis=0)     # (2C, 2C) for [x1|x3]
    w3 = jnp.stack([w_even, w_odd]).astype(mm_dtype)      # (2, 2C, 2C)
    if two_c_pad != two_c:
        # Zero-pad the output feature dim to a multiple of 128 lanes.
        w3 = jnp.pad(w3, ((0, 0), (0, 0), (0, two_c_pad - two_c)))
    return g2, b2, w3


def _pick_row_tile(rows, wh, block_tokens, fits):
    """Largest divisor of `rows` giving <= block_tokens tokens per tile, a
    sublane-friendly tile, >= 2 grid steps when possible, within VMEM budget."""
    target = max(1, block_tokens // max(1, wh))
    if rows >= 2:
        target = min(target, rows // 2)        # >= 2 grid steps (v7x has 2 TCs)
    target = max(1, target)
    divs = [d for d in range(1, rows + 1) if rows % d == 0]
    legal = [d for d in divs if (d * wh) % 8 == 0 or d == rows]
    good = [d for d in legal if d <= target and fits(d)]
    if good:
        return max(good)
    fallback = [d for d in legal if fits(d)]
    if fallback:
        return min(fallback)
    return min(legal)


def patch_merging(x, gamma, beta, weight, input_resolution, *,
                  block_tokens=1024, mm_dtype=None):
    """Forward pass of PatchMerging.

    x:      (B, L, C) with L == H * W
    gamma:  (4C,)  LayerNorm weight
    beta:   (4C,)  LayerNorm bias
    weight: (2C, 4C)  nn.Linear weight (torch layout, no bias)
    returns (B, (H//2) * (W//2), 2C), in x.dtype
    """
    H, W = input_resolution
    B, L, C = x.shape
    assert L == H * W, "input feature has wrong size"
    assert H % 2 == 0 and W % 2 == 0, f"x size ({H}x{W}) are not even."

    hh, wh = H // 2, W // 2
    two_c = 2 * C
    two_c_pad = (-(-two_c // 128) * 128) if two_c % 128 else two_c
    rows = B * hh
    n_tok = rows * wh

    if mm_dtype is None:
        # bf16 MXU path when the activations are bf16, else keep the weight dtype.
        mm_dtype = jnp.bfloat16 if x.dtype == jnp.dtype(jnp.bfloat16) else weight.dtype

    # Zero-copy view: (B, L, C) -> (B*H/2, parity, W/2, 2C).  Row r = b*(H/2)+i,
    # parity p selects input row 2i+p, and the trailing 2C packs (w-parity, C).
    x5 = x.reshape(rows, 2, wh, two_c)

    g2, b2, w3 = _split_params(gamma, beta, weight, C, two_c_pad, mm_dtype)

    x_item = jnp.dtype(x.dtype).itemsize
    w_item = jnp.dtype(mm_dtype).itemsize

    def make_fits(single_buffered):
        w_copies = 1 if single_buffered else 2

        def fits(th):
            tm = th * wh
            stream = 2 * 2 * tm * two_c * x_item           # even+odd, double-buffered
            out_b = 2 * tm * two_c_pad * x_item            # output, double-buffered
            w_b = w_copies * 2 * two_c * two_c_pad * w_item
            temps = 5 * tm * two_c * 4 + tm * two_c_pad * 4  # f32 working set
            return stream + out_b + w_b + temps + (1 << 20) <= _TILE_VMEM_BUDGET

        return fits

    def run(single_buffered):
        fits = make_fits(single_buffered)
        th = _pick_row_tile(rows, wh, block_tokens, fits)
        tm = th * wh
        grid = (rows // th,)

        const_kw = ({"pipeline_mode": pl.Buffered(buffer_count=1)}
                    if single_buffered else {})
        in_specs = [
            pl.BlockSpec((th, None, wh, two_c), lambda i: (i, 0, 0, 0)),
            pl.BlockSpec((th, None, wh, two_c), lambda i: (i, 1, 0, 0)),
            pl.BlockSpec((2, 1, two_c), lambda i: (0, 0, 0), **const_kw),
            pl.BlockSpec((2, 1, two_c), lambda i: (0, 0, 0), **const_kw),
            pl.BlockSpec((2, two_c, two_c_pad), lambda i: (0, 0, 0), **const_kw),
        ]
        out_spec = pl.BlockSpec((tm, two_c_pad), lambda i: (i, 0))

        return pl.pallas_call(
            _patch_merging_kernel,
            out_shape=jax.ShapeDtypeStruct((n_tok, two_c_pad), x.dtype),
            grid_spec=pltpu.PrefetchScalarGridSpec(
                num_scalar_prefetch=0,
                grid=grid,
                in_specs=in_specs,
                out_specs=out_spec,
            ),
            compiler_params=pltpu.CompilerParams(
                dimension_semantics=("parallel",),
                vmem_limit_bytes=_VMEM_LIMIT_BYTES,
            ),
        )(x5, x5, g2, b2, w3)

    single_buffered = _supports_single_buffering()
    try:
        out = run(single_buffered)
    except Exception:
        if not single_buffered:
            raise
        # Fallback for JAX builds where pl.Buffered(1) is not lowerable.
        out = run(False)

    if two_c_pad != two_c:
        out = out[:, :two_c]
    return out.reshape(B, hh * wh, two_c)


def _reference(x, gamma, beta, weight, input_resolution):
    H, W = input_resolution
    B, L, C = x.shape
    xv = x.reshape(B, H, W, C)
    x0 = xv[:, 0::2, 0::2, :]
    x1 = xv[:, 1::2, 0::2, :]
    x2 = xv[:, 0::2, 1::2, :]
    x3 = xv[:, 1::2, 1::2, :]
    xm = jnp.concatenate([x0, x1, x2, x3], axis=-1).reshape(B, -1, 4 * C)
    xm = xm.astype(jnp.float32)
    mean = jnp.mean(xm, axis=-1, keepdims=True)
    var = jnp.mean((xm - mean) ** 2, axis=-1, keepdims=True)
    xn = (xm - mean) / jnp.sqrt(var + LN_EPS) * gamma + beta
    out = jnp.einsum("blc,oc->blo", xn, weight.astype(jnp.float32),
                     precision=jax.lax.Precision.HIGHEST)
    return out.astype(x.dtype)


if __name__ == "__main__":
    # Small shapes consistent with the module: B=2, C=4, H=W=16 -> L=256.
    B, C, H, W = 2, 4, 16, 16
    L = H * W

    key = jax.random.PRNGKey(0)
    kx, kw, kg, kb = jax.random.split(key, 4)

    x = jax.random.normal(kx, (B, L, C), dtype=jnp.float32)
    # Parameters per nn.Linear(4C, 2C, bias=False) and nn.LayerNorm(4C).
    weight = jax.random.normal(kw, (2 * C, 4 * C), dtype=jnp.float32) * 0.1
    gamma = 1.0 + 0.1 * jax.random.normal(kg, (4 * C,), dtype=jnp.float32)
    beta = 0.1 * jax.random.normal(kb, (4 * C,), dtype=jnp.float32)

    out = patch_merging(x, gamma, beta, weight, (H, W))
    out = jax.block_until_ready(out)

    ref = _reference(x, gamma, beta, weight, (H, W))
    assert out.shape == (B, (H // 2) * (W // 2), 2 * C)
    err = float(jnp.max(jnp.abs(out - ref)))
    assert jnp.allclose(out, ref, atol=1e-4, rtol=1e-4), err

    print("KERNEL_OK")
</pallas_src>

<mosaic_0001>
module attributes {stable_mosaic.version = 11 : i64} {
  func.func @_patch_merging_kernel(%arg0: i32, %arg1: memref<8x1x8x8xf32, #tpu.memory_space<vmem>>, %arg2: memref<8x1x8x8xf32, #tpu.memory_space<vmem>>, %arg3: memref<2x1x8xf32, #tpu.memory_space<vmem>>, %arg4: memref<2x1x8xf32, #tpu.memory_space<vmem>>, %arg5: memref<2x8x128xf32, #tpu.memory_space<vmem>>, %arg6: memref<64x128xf32, #tpu.memory_space<vmem>>) attributes {dimension_semantics = [#tpu.dimension_semantics<parallel>], iteration_bounds = array<i64: 2>, scalar_prefetch = 0 : i64, scratch_operands = 0 : i64, tpu.core_type = #tpu.core_type<tc>, window_params = [{transform_indices = @transform_0, window_bounds = array<i64: 8, 1, 8, 8>}, {transform_indices = @transform_1, window_bounds = array<i64: 8, 1, 8, 8>}, {pipeline_mode = #tpu.pipeline_mode<synchronous>, transform_indices = @transform_2, window_bounds = array<i64: 2, 1, 8>}, {pipeline_mode = #tpu.pipeline_mode<synchronous>, transform_indices = @transform_3, window_bounds = array<i64: 2, 1, 8>}, {pipeline_mode = #tpu.pipeline_mode<synchronous>, transform_indices = @transform_4, window_bounds = array<i64: 2, 8, 128>}, {transform_indices = @transform_5, window_bounds = array<i64: 64, 128>}]} {
    %c0 = arith.constant 0 : index
    %c0_0 = arith.constant 0 : index
    %c0_1 = arith.constant 0 : index
    %c0_2 = arith.constant 0 : index
    %0 = vector.load %arg1[%c0, %c0_0, %c0_1, %c0_2] : memref<8x1x8x8xf32, #tpu.memory_space<vmem>>, vector<8x1x8x8xf32>
    %1 = vector.shape_cast %0 : vector<8x1x8x8xf32> to vector<8x8x8xf32>
    %2 = vector.shape_cast %1 : vector<8x8x8xf32> to vector<64x8xf32>
    %c0_3 = arith.constant 0 : index
    %c0_4 = arith.constant 0 : index
    %c0_5 = arith.constant 0 : index
    %c0_6 = arith.constant 0 : index
    %3 = vector.load %arg2[%c0_3, %c0_4, %c0_5, %c0_6] : memref<8x1x8x8xf32, #tpu.memory_space<vmem>>, vector<8x1x8x8xf32>
    %4 = vector.shape_cast %3 : vector<8x1x8x8xf32> to vector<8x8x8xf32>
    %5 = vector.shape_cast %4 : vector<8x8x8xf32> to vector<64x8xf32>
    %cst = arith.constant dense<0.000000e+00> : vector<64xf32>
    %6 = vector.multi_reduction <add>, %2, %cst [1] : vector<64x8xf32> to vector<64xf32>
    %7 = vector.shape_cast %6 : vector<64xf32> to vector<64x1xf32>
    %cst_7 = arith.constant dense<0.000000e+00> : vector<64xf32>
    %8 = vector.multi_reduction <add>, %5, %cst_7 [1] : vector<64x8xf32> to vector<64xf32>
    %9 = vector.shape_cast %8 : vector<64xf32> to vector<64x1xf32>
    %10 = arith.addf %7, %9 : vector<64x1xf32>
    %cst_8 = arith.constant 6.250000e-02 : f32
    %11 = vector.broadcast %cst_8 : f32 to vector<64x1xf32>
    %12 = arith.mulf %10, %11 : vector<64x1xf32>
    %13 = vector.broadcast %12 : vector<64x1xf32> to vector<64x8xf32>
    %14 = arith.subf %2, %13 : vector<64x8xf32>
    %15 = vector.broadcast %12 : vector<64x1xf32> to vector<64x8xf32>
    %16 = arith.subf %5, %15 : vector<64x8xf32>
    %17 = arith.mulf %14, %14 : vector<64x8xf32>
    %cst_9 = arith.constant dense<0.000000e+00> : vector<64xf32>
    %18 = vector.multi_reduction <add>, %17, %cst_9 [1] : vector<64x8xf32> to vector<64xf32>
    %19 = vector.shape_cast %18 : vector<64xf32> to vector<64x1xf32>
    %20 = arith.mulf %16, %16 : vector<64x8xf32>
    %cst_10 = arith.constant dense<0.000000e+00> : vector<64xf32>
    %21 = vector.multi_reduction <add>, %20, %cst_10 [1] : vector<64x8xf32> to vector<64xf32>
    %22 = vector.shape_cast %21 : vector<64xf32> to vector<64x1xf32>
    %23 = arith.addf %19, %22 : vector<64x1xf32>
    %cst_11 = arith.constant 6.250000e-02 : f32
    %24 = vector.broadcast %cst_11 : f32 to vector<64x1xf32>
    %25 = arith.mulf %23, %24 : vector<64x1xf32>
    %cst_12 = arith.constant 9.99999974E-6 : f32
    %26 = vector.broadcast %cst_12 : f32 to vector<64x1xf32>
    %27 = arith.addf %25, %26 : vector<64x1xf32>
    %28 = math.rsqrt %27 : vector<64x1xf32>
    %29 = vector.broadcast %28 : vector<64x1xf32> to vector<64x8xf32>
    %30 = arith.mulf %14, %29 : vector<64x8xf32>
    %c0_13 = arith.constant 0 : index
    %c0_14 = arith.constant 0 : index
    %c0_15 = arith.constant 0 : index
    %31 = vector.load %arg3[%c0_13, %c0_14, %c0_15] : memref<2x1x8xf32, #tpu.memory_space<vmem>>, vector<1x1x8xf32>
    %32 = vector.shape_cast %31 : vector<1x1x8xf32> to vector<1x8xf32>
    %33 = vector.broadcast %32 : vector<1x8xf32> to vector<64x8xf32>
    %34 = arith.mulf %30, %33 : vector<64x8xf32>
    %c0_16 = arith.constant 0 : index
    %c0_17 = arith.constant 0 : index
    %c0_18 = arith.constant 0 : index
    %35 = vector.load %arg4[%c0_16, %c0_17, %c0_18] : memref<2x1x8xf32, #tpu.memory_space<vmem>>, vector<1x1x8xf32>
    %36 = vector.shape_cast %35 : vector<1x1x8xf32> to vector<1x8xf32>
    %37 = vector.broadcast %36 : vector<1x8xf32> to vector<64x8xf32>
    %38 = arith.addf %34, %37 : vector<64x8xf32>
    %39 = vector.broadcast %28 : vector<64x1xf32> to vector<64x8xf32>
    %40 = arith.mulf %16, %39 : vector<64x8xf32>
    %c1 = arith.constant 1 : index
    %c0_19 = arith.constant 0 : index
    %c0_20 = arith.constant 0 : index
    %41 = vector.load %arg3[%c1, %c0_19, %c0_20] : memref<2x1x8xf32, #tpu.memory_space<vmem>>, vector<1x1x8xf32>
    %42 = vector.shape_cast %41 : vector<1x1x8xf32> to vector<1x8xf32>
    %43 = vector.broadcast %42 : vector<1x8xf32> to vector<64x8xf32>
    %44 = arith.mulf %40, %43 : vector<64x8xf32>
    %c1_21 = arith.constant 1 : index
    %c0_22 = arith.constant 0 : index
    %c0_23 = arith.constant 0 : index
    %45 = vector.load %arg4[%c1_21, %c0_22, %c0_23] : memref<2x1x8xf32, #tpu.memory_space<vmem>>, vector<1x1x8xf32>
    %46 = vector.shape_cast %45 : vector<1x1x8xf32> to vector<1x8xf32>
    %47 = vector.broadcast %46 : vector<1x8xf32> to vector<64x8xf32>
    %48 = arith.addf %44, %47 : vector<64x8xf32>
    %c0_24 = arith.constant 0 : index
    %c0_25 = arith.constant 0 : index
    %c0_26 = arith.constant 0 : index
    %49 = vector.load %arg5[%c0_24, %c0_25, %c0_26] : memref<2x8x128xf32, #tpu.memory_space<vmem>>, vector<1x8x128xf32>
    %50 = vector.shape_cast %49 : vector<1x8x128xf32> to vector<8x128xf32>
    %cst_27 = arith.constant dense<0.000000e+00> : vector<64x128xf32>
    %51 = tpu.matmul %38, %50, %cst_27 {dimension_numbers = #tpu.dot_dimension_numbers<[1], [0], [0], [1], [0, 0, 1, 1], [], []>} : vector<64x8xf32>, vector<8x128xf32>, vector<64x128xf32> -> vector<64x128xf32>
    %c1_28 = arith.constant 1 : index
    %c0_29 = arith.constant 0 : index
    %c0_30 = arith.constant 0 : index
    %52 = vector.load %arg5[%c1_28, %c0_29, %c0_30] : memref<2x8x128xf32, #tpu.memory_space<vmem>>, vector<1x8x128xf32>
    %53 = vector.shape_cast %52 : vector<1x8x128xf32> to vector<8x128xf32>
    %cst_31 = arith.constant dense<0.000000e+00> : vector<64x128xf32>
    %54 = tpu.matmul %48, %53, %cst_31 {dimension_numbers = #tpu.dot_dimension_numbers<[1], [0], [0], [1], [0, 0, 1, 1], [], []>} : vector<64x8xf32>, vector<8x128xf32>, vector<64x128xf32> -> vector<64x128xf32>
    %55 = arith.addf %51, %54 : vector<64x128xf32>
    %c0_32 = arith.constant 0 : index
    %c0_33 = arith.constant 0 : index
    %56 = vector.load %arg6[%c0_32, %c0_33] : memref<64x128xf32, #tpu.memory_space<vmem>>, vector<64x128xf32>
    tpu.vector_store %arg6[%c0_32, %c0_33], %55 {strides = array<i32>} : memref<64x128xf32, #tpu.memory_space<vmem>>, vector<64x128xf32>,
    return
  }
  func.func @transform_0(%arg0: i32) -> (i32, i32, i32, i32) {
    %c0_i32 = arith.constant 0 : i32
    %c0_i32_0 = arith.constant 0 : i32
    %c0_i32_1 = arith.constant 0 : i32
    %c0_i32_2 = arith.constant 0 : i32
    return %arg0, %c0_i32, %c0_i32_0, %c0_i32_1 : i32, i32, i32, i32
  }
  func.func @transform_1(%arg0: i32) -> (i32, i32, i32, i32) {
    %c1_i32 = arith.constant 1 : i32
    %c0_i32 = arith.constant 0 : i32
    %c0_i32_0 = arith.constant 0 : i32
    %c0_i32_1 = arith.constant 0 : i32
    return %arg0, %c1_i32, %c0_i32, %c0_i32_0 : i32, i32, i32, i32
  }
  func.func @transform_2(%arg0: i32) -> (i32, i32, i32) {
    %c0_i32 = arith.constant 0 : i32
    %c0_i32_0 = arith.constant 0 : i32
    %c0_i32_1 = arith.constant 0 : i32
    %c0_i32_2 = arith.constant 0 : i32
    return %c0_i32, %c0_i32_0, %c0_i32_1 : i32, i32, i32
  }
  func.func @transform_3(%arg0: i32) -> (i32, i32, i32) {
    %c0_i32 = arith.constant 0 : i32
    %c0_i32_0 = arith.constant 0 : i32
    %c0_i32_1 = arith.constant 0 : i32
    %c0_i32_2 = arith.constant 0 : i32
    return %c0_i32, %c0_i32_0, %c0_i32_1 : i32, i32, i32
  }
  func.func @transform_4(%arg0: i32) -> (i32, i32, i32) {
    %c0_i32 = arith.constant 0 : i32
    %c0_i32_0 = arith.constant 0 : i32
    %c0_i32_1 = arith.constant 0 : i32
    %c0_i32_2 = arith.constant 0 : i32
    return %c0_i32, %c0_i32_0, %c0_i32_1 : i32, i32, i32
  }
  func.func @transform_5(%arg0: i32) -> (i32, i32) {
    %c0_i32 = arith.constant 0 : i32
    %c0_i32_0 = arith.constant 0 : i32
    return %arg0, %c0_i32 : i32, i32
  }
}

module attributes {stable_mosaic.version = 11 : i64} {
  func.func @_patch_merging_kernel(%arg0: i32, %arg1: memref<8x1x8x8xf32, #tpu.memory_space<vmem>>, %arg2: memref<8x1x8x8xf32, #tpu.memory_space<vmem>>, %arg3: memref<2x1x8xf32, #tpu.memory_space<vmem>>, %arg4: memref<2x1x8xf32, #tpu.memory_space<vmem>>, %arg5: memref<2x8x128xf32, #tpu.memory_space<vmem>>, %arg6: memref<64x128xf32, #tpu.memory_space<vmem>>) attributes {dimension_semantics = [#tpu.dimension_semantics<parallel>], iteration_bounds = array<i64: 2>, scalar_prefetch = 0 : i64, scratch_operands = 0 : i64, tpu.core_type = #tpu.core_type<tc>, window_params = [{transform_indices = @transform_0, window_bounds = array<i64: 8, 1, 8, 8>}, {transform_indices = @transform_1, window_bounds = array<i64: 8, 1, 8, 8>}, {pipeline_mode = #tpu.pipeline_mode<synchronous>, transform_indices = @transform_2, window_bounds = array<i64: 2, 1, 8>}, {pipeline_mode = #tpu.pipeline_mode<synchronous>, transform_indices = @transform_3, window_bounds = array<i64: 2, 1, 8>}, {pipeline_mode = #tpu.pipeline_mode<synchronous>, transform_indices = @transform_4, window_bounds = array<i64: 2, 8, 128>}, {transform_indices = @transform_5, window_bounds = array<i64: 64, 128>}]} {
    %c0 = arith.constant 0 : index
    %c0_0 = arith.constant 0 : index
    %c0_1 = arith.constant 0 : index
    %c0_2 = arith.constant 0 : index
    %0 = vector.load %arg1[%c0, %c0_0, %c0_1, %c0_2] : memref<8x1x8x8xf32, #tpu.memory_space<vmem>>, vector<8x1x8x8xf32>
    %1 = vector.shape_cast %0 : vector<8x1x8x8xf32> to vector<8x8x8xf32>
    %2 = vector.shape_cast %1 : vector<8x8x8xf32> to vector<64x8xf32>
    %c0_3 = arith.constant 0 : index
    %c0_4 = arith.constant 0 : index
    %c0_5 = arith.constant 0 : index
    %c0_6 = arith.constant 0 : index
    %3 = vector.load %arg2[%c0_3, %c0_4, %c0_5, %c0_6] : memref<8x1x8x8xf32, #tpu.memory_space<vmem>>, vector<8x1x8x8xf32>
    %4 = vector.shape_cast %3 : vector<8x1x8x8xf32> to vector<8x8x8xf32>
    %5 = vector.shape_cast %4 : vector<8x8x8xf32> to vector<64x8xf32>
    %cst = arith.constant dense<0.000000e+00> : vector<64xf32>
    %6 = vector.multi_reduction <add>, %2, %cst [1] : vector<64x8xf32> to vector<64xf32>
    %7 = vector.shape_cast %6 : vector<64xf32> to vector<64x1xf32>
    %cst_7 = arith.constant dense<0.000000e+00> : vector<64xf32>
    %8 = vector.multi_reduction <add>, %5, %cst_7 [1] : vector<64x8xf32> to vector<64xf32>
    %9 = vector.shape_cast %8 : vector<64xf32> to vector<64x1xf32>
    %10 = arith.addf %7, %9 : vector<64x1xf32>
    %cst_8 = arith.constant 6.250000e-02 : f32
    %11 = vector.broadcast %cst_8 : f32 to vector<64x1xf32>
    %12 = arith.mulf %10, %11 : vector<64x1xf32>
    %13 = vector.broadcast %12 : vector<64x1xf32> to vector<64x8xf32>
    %14 = arith.subf %2, %13 : vector<64x8xf32>
    %15 = vector.broadcast %12 : vector<64x1xf32> to vector<64x8xf32>
    %16 = arith.subf %5, %15 : vector<64x8xf32>
    %17 = arith.mulf %14, %14 : vector<64x8xf32>
    %cst_9 = arith.constant dense<0.000000e+00> : vector<64xf32>
    %18 = vector.multi_reduction <add>, %17, %cst_9 [1] : vector<64x8xf32> to vector<64xf32>
    %19 = vector.shape_cast %18 : vector<64xf32> to vector<64x1xf32>
    %20 = arith.mulf %16, %16 : vector<64x8xf32>
    %cst_10 = arith.constant dense<0.000000e+00> : vector<64xf32>
    %21 = vector.multi_reduction <add>, %20, %cst_10 [1] : vector<64x8xf32> to vector<64xf32>
    %22 = vector.shape_cast %21 : vector<64xf32> to vector<64x1xf32>
    %23 = arith.addf %19, %22 : vector<64x1xf32>
    %cst_11 = arith.constant 6.250000e-02 : f32
    %24 = vector.broadcast %cst_11 : f32 to vector<64x1xf32>
    %25 = arith.mulf %23, %24 : vector<64x1xf32>
    %cst_12 = arith.constant 9.99999974E-6 : f32
    %26 = vector.broadcast %cst_12 : f32 to vector<64x1xf32>
    %27 = arith.addf %25, %26 : vector<64x1xf32>
    %28 = math.rsqrt %27 : vector<64x1xf32>
    %29 = vector.broadcast %28 : vector<64x1xf32> to vector<64x8xf32>
    %30 = arith.mulf %14, %29 : vector<64x8xf32>
    %c0_13 = arith.constant 0 : index
    %c0_14 = arith.constant 0 : index
    %c0_15 = arith.constant 0 : index
    %31 = vector.load %arg3[%c0_13, %c0_14, %c0_15] : memref<2x1x8xf32, #tpu.memory_space<vmem>>, vector<1x1x8xf32>
    %32 = vector.shape_cast %31 : vector<1x1x8xf32> to vector<1x8xf32>
    %33 = vector.broadcast %32 : vector<1x8xf32> to vector<64x8xf32>
    %34 = arith.mulf %30, %33 : vector<64x8xf32>
    %c0_16 = arith.constant 0 : index
    %c0_17 = arith.constant 0 : index
    %c0_18 = arith.constant 0 : index
    %35 = vector.load %arg4[%c0_16, %c0_17, %c0_18] : memref<2x1x8xf32, #tpu.memory_space<vmem>>, vector<1x1x8xf32>
    %36 = vector.shape_cast %35 : vector<1x1x8xf32> to vector<1x8xf32>
    %37 = vector.broadcast %36 : vector<1x8xf32> to vector<64x8xf32>
    %38 = arith.addf %34, %37 : vector<64x8xf32>
    %39 = vector.broadcast %28 : vector<64x1xf32> to vector<64x8xf32>
    %40 = arith.mulf %16, %39 : vector<64x8xf32>
    %c1 = arith.constant 1 : index
    %c0_19 = arith.constant 0 : index
    %c0_20 = arith.constant 0 : index
    %41 = vector.load %arg3[%c1, %c0_19, %c0_20] : memref<2x1x8xf32, #tpu.memory_space<vmem>>, vector<1x1x8xf32>
    %42 = vector.shape_cast %41 : vector<1x1x8xf32> to vector<1x8xf32>
    %43 = vector.broadcast %42 : vector<1x8xf32> to vector<64x8xf32>
    %44 = arith.mulf %40, %43 : vector<64x8xf32>
    %c1_21 = arith.constant 1 : index
    %c0_22 = arith.constant 0 : index
    %c0_23 = arith.constant 0 : index
    %45 = vector.load %arg4[%c1_21, %c0_22, %c0_23] : memref<2x1x8xf32, #tpu.memory_space<vmem>>, vector<1x1x8xf32>
    %46 = vector.shape_cast %45 : vector<1x1x8xf32> to vector<1x8xf32>
    %47 = vector.broadcast %46 : vector<1x8xf32> to vector<64x8xf32>
    %48 = arith.addf %44, %47 : vector<64x8xf32>
    %c0_24 = arith.constant 0 : index
    %c0_25 = arith.constant 0 : index
    %c0_26 = arith.constant 0 : index
    %49 = vector.load %arg5[%c0_24, %c0_25, %c0_26] : memref<2x8x128xf32, #tpu.memory_space<vmem>>, vector<1x8x128xf32>
    %50 = vector.shape_cast %49 : vector<1x8x128xf32> to vector<8x128xf32>
    %cst_27 = arith.constant dense<0.000000e+00> : vector<64x128xf32>
    %51 = tpu.matmul %38, %50, %cst_27 {dimension_numbers = #tpu.dot_dimension_numbers<[1], [0], [0], [1], [0, 0, 1, 1], [], []>} : vector<64x8xf32>, vector<8x128xf32>, vector<64x128xf32> -> vector<64x128xf32>
    %c1_28 = arith.constant 1 : index
    %c0_29 = arith.constant 0 : index
    %c0_30 = arith.constant 0 : index
    %52 = vector.load %arg5[%c1_28, %c0_29, %c0_30] : memref<2x8x128xf32, #tpu.memory_space<vmem>>, vector<1x8x128xf32>
    %53 = vector.shape_cast %52 : vector<1x8x128xf32> to vector<8x128xf32>
    %cst_31 = arith.constant dense<0.000000e+00> : vector<64x128xf32>
    %54 = tpu.matmul %48, %53, %cst_31 {dimension_numbers = #tpu.dot_dimension_numbers<[1], [0], [0], [1], [0, 0, 1, 1], [], []>} : vector<64x8xf32>, vector<8x128xf32>, vector<64x128xf32> -> vector<64x128xf32>
    %55 = arith.addf %51, %54 : vector<64x128xf32>
    %c0_32 = arith.constant 0 : index
    %c0_33 = arith.constant 0 : index
    %56 = vector.load %arg6[%c0_32, %c0_33] : memref<64x128xf32, #tpu.memory_space<vmem>>, vector<64x128xf32>
    tpu.vector_store %arg6[%c0_32, %c0_33], %55 {strides = array<i32>} : memref<64x128xf32, #tpu.memory_space<vmem>>, vector<64x128xf32>,
    return
  }
  func.func @transform_0(%arg0: i32) -> (i32, i32, i32, i32) {
    %c0_i32 = arith.constant 0 : i32
    %c0_i32_0 = arith.constant 0 : i32
    %c0_i32_1 = arith.constant 0 : i32
    %c0_i32_2 = arith.constant 0 : i32
    return %arg0, %c0_i32, %c0_i32_0, %c0_i32_1 : i32, i32, i32, i32
  }
  func.func @transform_1(%arg0: i32) -> (i32, i32, i32, i32) {
    %c1_i32 = arith.constant 1 : i32
    %c0_i32 = arith.constant 0 : i32
    %c0_i32_0 = arith.constant 0 : i32
    %c0_i32_1 = arith.constant 0 : i32
    return %arg0, %c1_i32, %c0_i32, %c0_i32_0 : i32, i32, i32, i32
  }
  func.func @transform_2(%arg0: i32) -> (i32, i32, i32) {
    %c0_i32 = arith.constant 0 : i32
    %c0_i32_0 = arith.constant 0 : i32
    %c0_i32_1 = arith.constant 0 : i32
    %c0_i32_2 = arith.constant 0 : i32
    return %c0_i32, %c0_i32_0, %c0_i32_1 : i32, i32, i32
  }
  func.func @transform_3(%arg0: i32) -> (i32, i32, i32) {
    %c0_i32 = arith.constant 0 : i32
    %c0_i32_0 = arith.constant 0 : i32
    %c0_i32_1 = arith.constant 0 : i32
    %c0_i32_2 = arith.constant 0 : i32
    return %c0_i32, %c0_i32_0, %c0_i32_1 : i32, i32, i32
  }
  func.func @transform_4(%arg0: i32) -> (i32, i32, i32) {
    %c0_i32 = arith.constant 0 : i32
    %c0_i32_0 = arith.constant 0 : i32
    %c0_i32_1 = arith.constant 0 : i32
    %c0_i32_2 = arith.constant 0 : i32
    return %c0_i32, %c0_i32_0, %c0_i32_1 : i32, i32, i32
  }
  func.func @transform_5(%arg0: i32) -> (i32, i32) {
    %c0_i32 = arith.constant 0 : i32
    %c0_i32_0 = arith.constant 0 : i32
    return %arg0, %c0_i32 : i32, i32
  }
}

</mosaic_0001>

<llo_original>
// kernel: tpu_custom_call.1
$region0: #{tpu_custom_call.1}
  #allocation0 [shape = 'u32[]', space=smem, size = 0x4, offset = 0x4, fixed_abs, tag = 'smem constant byte address 0x4 - core index']
  #allocation1 [shape = 'u32[72,128]{1,0:T(1,128)}', space=vmem, size = 0x9000, scoped, tag = 'internal scratch']
  %s0 = inlined_call_operand.vmem [shape: f32[16,2,8,8], index: 0, kind: input, shape index: {}]
  %s1 = inlined_call_operand.vmem [shape: f32[16,2,8,8], index: 1, kind: input, shape index: {}]
  %s2 = inlined_call_operand.vmem [shape: f32[2,1,8], index: 2, kind: input, shape index: {}]
  %s3 = inlined_call_operand.vmem [shape: f32[2,1,8], index: 3, kind: input, shape index: {}]
  %s4 = inlined_call_operand.vmem [shape: f32[2,8,128], index: 4, kind: input, shape index: {}]
  %s5 = inlined_call_operand.hbm [shape: f32[128,128], index: 5, kind: output, shape index: {}]
  %s6 = sld [smem:[#allocation0]]
  $region129: #{tpu_custom_call.1} parent=0
    _
  %s8 = ssub.s32 1, %s6
  %s9 = scalar_select 0, %s8, %s6
  $region1: #{tpu_custom_call.1} parent=0
    #allocation2 [shape = 'u8[65536]{0}', space=vmem, size = 0x10000, scoped, tag = 'input window, operand 0']
    #allocation3 [shape = 'u8[65536]{0}', space=vmem, size = 0x10000, scoped, tag = 'input window, operand 1']
    #allocation4 [shape = 'u8[65536]{0}', space=vmem, size = 0x10000, scoped, tag = 'output window, operand 0']
    #allocation5 [shape = 's32[2]{0}', space=sflag, size = 0x8, scoped, tag = 'scoped memory for tpu_custom_call.1']
    %10 = vsyncpa [#allocation5], 0
    %s11 = scalar_lea.sflag [#allocation5], 1
    %12 = vsyncpa %s11, 0
    loop: start=0, step=1, limit=4
    $region2: #{tpu_custom_call.1} parent=1 // loop_pre_header
      _
    $region3: #{tpu_custom_call.1} parent=1 // loop_header
      %s14 = sphi 0, %s18
      %p15 = scmp.ge.s32.totalorder %s14, 4
      %s24 = sphi 0, %s26
      %s27 = sphi 0, %s24
      %s28 = sphi 0, %s27
      %s44 = sphi 0, %s28
      %s50 = sphi 0, %s52
      %s53 = sphi 0, %s50
      %s54 = sphi 0, %s53
      %s70 = sphi 0, %s54
      %s74 = sphi 0, %s74
      %s76 = sphi 0, %s74
      %s77 = sphi 0, %s76
      %s91 = sphi 0, %s77
      %s95 = sphi 0, %s95
      %s97 = sphi 0, %s95
      %s98 = sphi 0, %s97
      %s112 = sphi 0, %s98
      %s116 = sphi 0, %s116
      %s118 = sphi 0, %s116
      %s119 = sphi 0, %s118
      %s133 = sphi 0, %s119
      %s139 = sphi 0, %s141
      %s142 = sphi 0, %s139
      %s143 = sphi 0, %s142
      %s159 = sphi 0, %s143
    $region4: #{tpu_custom_call.1} parent=1 // loop_header_branch
      %17 = sbr.rel (%p15) target = $region8
    $region5: #{tpu_custom_call.1} parent=1 // loop_body
      %s19 = ssub.s32 %s14, 1
      %s20 = ssub.s32 %s14, 2
      %s21 = sadd.s32 %s14, 1
      %s22 = ssub.s32 %s14, %s21
      %p23 = scmp.eq.s32.totalorder %s22, 0
      %s25 = sadd.s32 %s24, 1
      %s26 = scalar_select %p23, %s24, %s25
      %p29 = pneg %p23
      %p30 = scmp.eq.s32.totalorder %s14, 1
      %p31 = por %p29, %p30
      %p32 = scmp.ne.s32.totalorder %s24, %s27
      %p33 = scmp.eq.s32.totalorder %s14, 0
      %p34 = por %p32, %p33
      %p35 = scmp.ne.s32.totalorder %s24, %s27
      %p36 = scmp.eq.s32.totalorder %s19, 1
      %p37 = por %p35, %p36
      %p38 = scmp.ne.s32.totalorder %s27, %s28
      %p39 = scmp.eq.s32.totalorder %s19, 0
      %p40 = por %p38, %p39
      %p41 = scmp.ne.s32.totalorder %s27, %s28
      %p42 = scmp.eq.s32.totalorder %s20, 1
      %p43 = por %p41, %p42
      %p45 = scmp.ne.s32.totalorder %s28, %s44
      %p46 = scmp.eq.s32.totalorder %s20, 0
      %p47 = por %p45, %p46
      %s48 = ssub.s32 %s14, %s21
      %p49 = scmp.eq.s32.totalorder %s48, 0
      %s51 = sadd.s32 %s50, 1
      %s52 = scalar_select %p49, %s50, %s51
      %p55 = pneg %p49
      %p56 = scmp.eq.s32.totalorder %s14, 1
      %p57 = por %p55, %p56
      %p58 = scmp.ne.s32.totalorder %s50, %s53
      %p59 = scmp.eq.s32.totalorder %s14, 0
      %p60 = por %p58, %p59
      %p61 = scmp.ne.s32.totalorder %s50, %s53
      %p62 = scmp.eq.s32.totalorder %s19, 1
      %p63 = por %p61, %p62
      %p64 = scmp.ne.s32.totalorder %s53, %s54
      %p65 = scmp.eq.s32.totalorder %s19, 0
      %p66 = por %p64, %p65
      %p67 = scmp.ne.s32.totalorder %s53, %s54
      %p68 = scmp.eq.s32.totalorder %s20, 1
      %p69 = por %p67, %p68
      %p71 = scmp.ne.s32.totalorder %s54, %s70
      %p72 = scmp.eq.s32.totalorder %s20, 0
      %p73 = por %p71, %p72
      %s75 = sadd.s32 %s74, 1
      %p78 = scmp.eq.s32.totalorder %s14, 1
      %p79 = scmp.ne.s32.totalorder %s74, %s76
      %p80 = scmp.eq.s32.totalorder %s14, 0
      %p81 = por %p79, %p80
      %p82 = scmp.ne.s32.totalorder %s74, %s76
      %p83 = scmp.eq.s32.totalorder %s19, 1
      %p84 = por %p82, %p83
      %p85 = scmp.ne.s32.totalorder %s76, %s77
      %p86 = scmp.eq.s32.totalorder %s19, 0
      %p87 = por %p85, %p86
      %p88 = scmp.ne.s32.totalorder %s76, %s77
      %p89 = scmp.eq.s32.totalorder %s20, 1
      %p90 = por %p88, %p89
      %p92 = scmp.ne.s32.totalorder %s77, %s91
      %p93 = scmp.eq.s32.totalorder %s20, 0
      %p94 = por %p92, %p93
      %s96 = sadd.s32 %s95, 1
      %p99 = scmp.eq.s32.totalorder %s14, 1
      %p100 = scmp.ne.s32.totalorder %s95, %s97
      %p101 = scmp.eq.s32.totalorder %s14, 0
      %p102 = por %p100, %p101
      %p103 = scmp.ne.s32.totalorder %s95, %s97
      %p104 = scmp.eq.s32.totalorder %s19, 1
      %p105 = por %p103, %p104
      %p106 = scmp.ne.s32.totalorder %s97, %s98
      %p107 = scmp.eq.s32.totalorder %s19, 0
      %p108 = por %p106, %p107
      %p109 = scmp.ne.s32.totalorder %s97, %s98
      %p110 = scmp.eq.s32.totalorder %s20, 1
      %p111 = por %p109, %p110
      %p113 = scmp.ne.s32.totalorder %s98, %s112
      %p114 = scmp.eq.s32.totalorder %s20, 0
      %p115 = por %p113, %p114
      %s117 = sadd.s32 %s116, 1
      %p120 = scmp.eq.s32.totalorder %s14, 1
      %p121 = scmp.ne.s32.totalorder %s116, %s118
      %p122 = scmp.eq.s32.totalorder %s14, 0
      %p123 = por %p121, %p122
      %p124 = scmp.ne.s32.totalorder %s116, %s118
      %p125 = scmp.eq.s32.totalorder %s19, 1
      %p126 = por %p124, %p125
      %p127 = scmp.ne.s32.totalorder %s118, %s119
      %p128 = scmp.eq.s32.totalorder %s19, 0
      %p129 = por %p127, %p128
      %p130 = scmp.ne.s32.totalorder %s118, %s119
      %p131 = scmp.eq.s32.totalorder %s20, 1
      %p132 = por %p130, %p131
      %p134 = scmp.ne.s32.totalorder %s119, %s133
      %p135 = scmp.eq.s32.totalorder %s20, 0
      %p136 = por %p134, %p135
      %s137 = ssub.s32 %s14, %s21
      %p138 = scmp.eq.s32.totalorder %s137, 0
      %s140 = sadd.s32 %s139, 1
      %s141 = scalar_select %p138, %s139, %s140
      %p144 = pneg %p138
      %p145 = scmp.eq.s32.totalorder %s14, 1
      %p146 = por %p144, %p145
      %p147 = scmp.ne.s32.totalorder %s139, %s142
      %p148 = scmp.eq.s32.totalorder %s14, 0
      %p149 = por %p147, %p148
      %p150 = scmp.ne.s32.totalorder %s139, %s142
      %p151 = scmp.eq.s32.totalorder %s19, 1
      %p152 = por %p150, %p151
      %p153 = scmp.ne.s32.totalorder %s142, %s143
      %p154 = scmp.eq.s32.totalorder %s19, 0
      %p155 = por %p153, %p154
      %p156 = scmp.ne.s32.totalorder %s142, %s143
      %p157 = scmp.eq.s32.totalorder %s20, 1
      %p158 = por %p156, %p157
      %p160 = scmp.ne.s32.totalorder %s143, %s159
      %p161 = scmp.eq.s32.totalorder %s20, 0
      %p162 = por %p160, %p161
      %p163 = scmp.le.s32.totalorder 1, %s14
      %p164 = scmp.lt.s32.totalorder %s14, 3
      %p165 = pnand %p163, %p164
      %p166 = pneg %p165
      // Predicated region
      $region9: #{tpu_custom_call.1} parent=5 // pred_check
        _
      $region10: #{tpu_custom_call.1} parent=5 // pred_check_branch
        %168 = sbr.rel (%p165) target = $region12
      $region11: #{tpu_custom_call.1} parent=5 // pred_region
        %s169 = ssub.s32 %s14, 1
        // Predicated region
        $region13: #{tpu_custom_call.1} parent=11 // pred_check
          %p170 = pneg %p87
        $region14: #{tpu_custom_call.1} parent=11 // pred_check_branch
          %172 = sbr.rel (%p170) target = $region16
        $region15: #{tpu_custom_call.1} parent=11 // pred_region
          _
        $region16: #{tpu_custom_call.1} parent=11 // pred_fallthru
          _
        // Predicated region
        $region17: #{tpu_custom_call.1} parent=11 // pred_check
          %p173 = pneg %p108
        $region18: #{tpu_custom_call.1} parent=11 // pred_check_branch
          %175 = sbr.rel (%p173) target = $region20
        $region19: #{tpu_custom_call.1} parent=11 // pred_region
          _
        $region20: #{tpu_custom_call.1} parent=11 // pred_fallthru
          _
        // Predicated region
        $region21: #{tpu_custom_call.1} parent=11 // pred_check
          %p176 = pneg %p129
        $region22: #{tpu_custom_call.1} parent=11 // pred_check_branch
          %178 = sbr.rel (%p176) target = $region24
        $region23: #{tpu_custom_call.1} parent=11 // pred_region
          _
        $region24: #{tpu_custom_call.1} parent=11 // pred_fallthru
          _
      $region12: #{tpu_custom_call.1} parent=5 // pred_fallthru
        _
      %p179 = scmp.lt.s32.totalorder %s14, 2
      // Predicated region
      $region25: #{tpu_custom_call.1} parent=5 // pred_check
        %p180 = pneg %p179
      $region26: #{tpu_custom_call.1} parent=5 // pred_check_branch
        %182 = sbr.rel (%p180) target = $region28
      $region27: #{tpu_custom_call.1} parent=5 // pred_region
        // Predicated region
        $region29: #{tpu_custom_call.1} parent=27 // pred_check
          %p183 = pneg %p34
        $region30: #{tpu_custom_call.1} parent=27 // pred_check_branch
          %185 = sbr.rel (%p183) target = $region32
        $region31: #{tpu_custom_call.1} parent=27 // pred_region
          %s186 = sand.u32 %s24, 1
          %s187 = sand.u32 %s24, 1
          %s188 = smul.addr %s187, 64
          %s189 = scalar_lea.vmem [#allocation2], %s188
          %s190 = smul.u32 8, %s14
          %s191 = smul.addr %s190, 2
          %s192 = smul.addr %s191, 8
          %s193 = scalar_lea.vmem %s0, %s192
          // Predicated region
          $region33: #{tpu_custom_call.1} parent=31 // pred_check
            _
          $region34: #{tpu_custom_call.1} parent=31 // pred_check_branch
            %195 = sbr.rel (0) target = $region36
          $region35: #{tpu_custom_call.1} parent=31 // pred_region
            // Predicated region
            $region37: #{tpu_custom_call.1} parent=35 // pred_check
              _
            $region38: #{tpu_custom_call.1} parent=35 // pred_check_branch
              %197 = sbr.rel (0) target = $region40
            $region39: #{tpu_custom_call.1} parent=35 // pred_region
              // Predicated region
              $region52: #{tpu_custom_call.1} parent=39 // pred_check
                _
              $region53: #{tpu_custom_call.1} parent=39 // pred_check_branch
                %227 = sbr.rel (0) target = $region55
              $region54: #{tpu_custom_call.1} parent=39 // pred_region
                loop: start=0, step=1, limit=1
                $region56: #{tpu_custom_call.1} parent=54 // loop_pre_header
                  _
                $region57: #{tpu_custom_call.1} parent=54 // loop_header
                  %s229 = sphi 0, %s233
                  %p230 = scmp.ge.s32.totalorder %s229, 1
                  %s234 = sphi %s193, %s193
                  %s235 = sphi %s189, %s189
                $region58: #{tpu_custom_call.1} parent=54 // loop_header_branch
                  %232 = sbr.rel (%p230) target = $region62
                $region59: #{tpu_custom_call.1} parent=54 // loop_body
                  %v236 = vld [vmem:[%s234] sm:$0xff]
                  %237 = vst [vmem:[%s235] sm:$0xff] %v236
                  %v238 = vld [vmem:[%s234 + $0x10] sm:$0xff]
                  %239 = vst [vmem:[%s235 + $0x8] sm:$0xff] %v238
                  %v240 = vld [vmem:[%s234 + $0x20] sm:$0xff]
                  %241 = vst [vmem:[%s235 + $0x10] sm:$0xff] %v240
                  %v242 = vld [vmem:[%s234 + $0x30] sm:$0xff]
                  %243 = vst [vmem:[%s235 + $0x18] sm:$0xff] %v242
                  %v244 = vld [vmem:[%s234 + $0x40] sm:$0xff]
                  %245 = vst [vmem:[%s235 + $0x20] sm:$0xff] %v244
                  %v246 = vld [vmem:[%s234 + $0x50] sm:$0xff]
                  %247 = vst [vmem:[%s235 + $0x28] sm:$0xff] %v246
                  %v248 = vld [vmem:[%s234 + $0x60] sm:$0xff]
                  %249 = vst [vmem:[%s235 + $0x30] sm:$0xff] %v248
                  %v250 = vld [vmem:[%s234 + $0x70] sm:$0xff]
                  %251 = vst [vmem:[%s235 + $0x38] sm:$0xff] %v250
                $region60: #{tpu_custom_call.1} parent=54 // loop_footer
                  %s233 = sadd.s32 1, %s229
                $region61: #{tpu_custom_call.1} parent=54 // loop_footer_branch
                  %228 = sbr.rel target = $region57
                $region62: #{tpu_custom_call.1} parent=54 // loop_exit
                  _
              $region55: #{tpu_custom_call.1} parent=39 // pred_fallthru
                _
              // Predicated region
              $region63: #{tpu_custom_call.1} parent=39 // pred_check
                _
              $region64: #{tpu_custom_call.1} parent=39 // pred_check_branch
                %253 = sbr.rel target = $region66
              $region65: #{tpu_custom_call.1} parent=39 // pred_region
                _
              $region66: #{tpu_custom_call.1} parent=39 // pred_fallthru
                _
            $region40: #{tpu_custom_call.1} parent=35 // pred_fallthru
              _
            // Predicated region
            $region41: #{tpu_custom_call.1} parent=35 // pred_check
              _
            $region42: #{tpu_custom_call.1} parent=35 // pred_check_branch
              %199 = sbr.rel target = $region44
            $region43: #{tpu_custom_call.1} parent=35 // pred_region
              %s201 = ssub.s32 256, 1
              loop: start=0, step=1, limit=1
              $region45: #{tpu_custom_call.1} parent=43 // loop_pre_header
                _
              $region46: #{tpu_custom_call.1} parent=43 // loop_header
                %s203 = sphi 0, %s207
                %p204 = scmp.ge.s32.totalorder %s203, 1
                %s208 = sphi %s193, %s193
                %s209 = sphi %s189, %s189
              $region47: #{tpu_custom_call.1} parent=43 // loop_header_branch
                %206 = sbr.rel (%p204) target = $region51
              $region48: #{tpu_custom_call.1} parent=43 // loop_body
                %v210 = vld [vmem:[%s208] sm:%s201]
                %211 = vst [vmem:[%s209] sm:%s201] %v210
                %v212 = vld [vmem:[%s208 + $0x10] sm:%s201]
                %213 = vst [vmem:[%s209 + $0x8] sm:%s201] %v212
                %v214 = vld [vmem:[%s208 + $0x20] sm:%s201]
                %215 = vst [vmem:[%s209 + $0x10] sm:%s201] %v214
                %v216 = vld [vmem:[%s208 + $0x30] sm:%s201]
                %217 = vst [vmem:[%s209 + $0x18] sm:%s201] %v216
                %v218 = vld [vmem:[%s208 + $0x40] sm:%s201]
                %219 = vst [vmem:[%s209 + $0x20] sm:%s201] %v218
                %v220 = vld [vmem:[%s208 + $0x50] sm:%s201]
                %221 = vst [vmem:[%s209 + $0x28] sm:%s201] %v220
                %v222 = vld [vmem:[%s208 + $0x60] sm:%s201]
                %223 = vst [vmem:[%s209 + $0x30] sm:%s201] %v222
                %v224 = vld [vmem:[%s208 + $0x70] sm:%s201]
                %225 = vst [vmem:[%s209 + $0x38] sm:%s201] %v224
              $region49: #{tpu_custom_call.1} parent=43 // loop_footer
                %s207 = sadd.s32 1, %s203
              $region50: #{tpu_custom_call.1} parent=43 // loop_footer_branch
                %202 = sbr.rel target = $region46
              $region51: #{tpu_custom_call.1} parent=43 // loop_exit
                _
            $region44: #{tpu_custom_call.1} parent=35 // pred_fallthru
              _
          $region36: #{tpu_custom_call.1} parent=31 // pred_fallthru
            _
          %254 = vnop
        $region32: #{tpu_custom_call.1} parent=27 // pred_fallthru
          _
        // Predicated region
        $region67: #{tpu_custom_call.1} parent=27 // pred_check
          %p255 = pneg %p60
        $region68: #{tpu_custom_call.1} parent=27 // pred_check_branch
          %257 = sbr.rel (%p255) target = $region70
        $region69: #{tpu_custom_call.1} parent=27 // pred_region
          %s258 = sand.u32 %s50, 1
          %s259 = sand.u32 %s50, 1
          %s260 = smul.addr %s259, 64
          %s261 = scalar_lea.vmem [#allocation3], %s260
          %s262 = smul.u32 8, %s14
          %s263 = smul.addr %s262, 2
          %s264 = sadd.s32 1, %s263
          %s265 = smul.addr %s264, 8
          %s266 = scalar_lea.vmem %s1, %s265
          // Predicated region
          $region71: #{tpu_custom_call.1} parent=69 // pred_check
            _
          $region72: #{tpu_custom_call.1} parent=69 // pred_check_branch
            %268 = sbr.rel (0) target = $region74
          $region73: #{tpu_custom_call.1} parent=69 // pred_region
            // Predicated region
            $region75: #{tpu_custom_call.1} parent=73 // pred_check
              _
            $region76: #{tpu_custom_call.1} parent=73 // pred_check_branch
              %270 = sbr.rel (0) target = $region78
            $region77: #{tpu_custom_call.1} parent=73 // pred_region
              // Predicated region
              $region90: #{tpu_custom_call.1} parent=77 // pred_check
                _
              $region91: #{tpu_custom_call.1} parent=77 // pred_check_branch
                %300 = sbr.rel (0) target = $region93
              $region92: #{tpu_custom_call.1} parent=77 // pred_region
                loop: start=0, step=1, limit=1
                $region94: #{tpu_custom_call.1} parent=92 // loop_pre_header
                  _
                $region95: #{tpu_custom_call.1} parent=92 // loop_header
                  %s302 = sphi 0, %s306
                  %p303 = scmp.ge.s32.totalorder %s302, 1
                  %s307 = sphi %s266, %s266
                  %s308 = sphi %s261, %s261
                $region96: #{tpu_custom_call.1} parent=92 // loop_header_branch
                  %305 = sbr.rel (%p303) target = $region100
                $region97: #{tpu_custom_call.1} parent=92 // loop_body
                  %v309 = vld [vmem:[%s307] sm:$0xff]
                  %310 = vst [vmem:[%s308] sm:$0xff] %v309
                  %v311 = vld [vmem:[%s307 + $0x10] sm:$0xff]
                  %312 = vst [vmem:[%s308 + $0x8] sm:$0xff] %v311
                  %v313 = vld [vmem:[%s307 + $0x20] sm:$0xff]
                  %314 = vst [vmem:[%s308 + $0x10] sm:$0xff] %v313
                  %v315 = vld [vmem:[%s307 + $0x30] sm:$0xff]
                  %316 = vst [vmem:[%s308 + $0x18] sm:$0xff] %v315
                  %v317 = vld [vmem:[%s307 + $0x40] sm:$0xff]
                  %318 = vst [vmem:[%s308 + $0x20] sm:$0xff] %v317
                  %v319 = vld [vmem:[%s307 + $0x50] sm:$0xff]
                  %320 = vst [vmem:[%s308 + $0x28] sm:$0xff] %v319
                  %v321 = vld [vmem:[%s307 + $0x60] sm:$0xff]
                  %322 = vst [vmem:[%s308 + $0x30] sm:$0xff] %v321
                  %v323 = vld [vmem:[%s307 + $0x70] sm:$0xff]
                  %324 = vst [vmem:[%s308 + $0x38] sm:$0xff] %v323
                $region98: #{tpu_custom_call.1} parent=92 // loop_footer
                  %s306 = sadd.s32 1, %s302
                $region99: #{tpu_custom_call.1} parent=92 // loop_footer_branch
                  %301 = sbr.rel target = $region95
                $region100: #{tpu_custom_call.1} parent=92 // loop_exit
                  _
              $region93: #{tpu_custom_call.1} parent=77 // pred_fallthru
                _
              // Predicated region
              $region101: #{tpu_custom_call.1} parent=77 // pred_check
                _
              $region102: #{tpu_custom_call.1} parent=77 // pred_check_branch
                %326 = sbr.rel target = $region104
              $region103: #{tpu_custom_call.1} parent=77 // pred_region
                _
              $region104: #{tpu_custom_call.1} parent=77 // pred_fallthru
                _
            $region78: #{tpu_custom_call.1} parent=73 // pred_fallthru
              _
            // Predicated region
            $region79: #{tpu_custom_call.1} parent=73 // pred_check
              _
            $region80: #{tpu_custom_call.1} parent=73 // pred_check_branch
              %272 = sbr.rel target = $region82
            $region81: #{tpu_custom_call.1} parent=73 // pred_region
              %s274 = ssub.s32 256, 1
              loop: start=0, step=1, limit=1
              $region83: #{tpu_custom_call.1} parent=81 // loop_pre_header
                _
              $region84: #{tpu_custom_call.1} parent=81 // loop_header
                %s276 = sphi 0, %s280
                %p277 = scmp.ge.s32.totalorder %s276, 1
                %s281 = sphi %s266, %s266
                %s282 = sphi %s261, %s261
              $region85: #{tpu_custom_call.1} parent=81 // loop_header_branch
                %279 = sbr.rel (%p277) target = $region89
              $region86: #{tpu_custom_call.1} parent=81 // loop_body
                %v283 = vld [vmem:[%s281] sm:%s274]
                %284 = vst [vmem:[%s282] sm:%s274] %v283
                %v285 = vld [vmem:[%s281 + $0x10] sm:%s274]
                %286 = vst [vmem:[%s282 + $0x8] sm:%s274] %v285
                %v287 = vld [vmem:[%s281 + $0x20] sm:%s274]
                %288 = vst [vmem:[%s282 + $0x10] sm:%s274] %v287
                %v289 = vld [vmem:[%s281 + $0x30] sm:%s274]
                %290 = vst [vmem:[%s282 + $0x18] sm:%s274] %v289
                %v291 = vld [vmem:[%s281 + $0x40] sm:%s274]
                %292 = vst [vmem:[%s282 + $0x20] sm:%s274] %v291
                %v293 = vld [vmem:[%s281 + $0x50] sm:%s274]
                %294 = vst [vmem:[%s282 + $0x28] sm:%s274] %v293
                %v295 = vld [vmem:[%s281 + $0x60] sm:%s274]
                %296 = vst [vmem:[%s282 + $0x30] sm:%s274] %v295
                %v297 = vld [vmem:[%s281 + $0x70] sm:%s274]
                %298 = vst [vmem:[%s282 + $0x38] sm:%s274] %v297
              $region87: #{tpu_custom_call.1} parent=81 // loop_footer
                %s280 = sadd.s32 1, %s276
              $region88: #{tpu_custom_call.1} parent=81 // loop_footer_branch
                %275 = sbr.rel target = $region84
              $region89: #{tpu_custom_call.1} parent=81 // loop_exit
                _
            $region82: #{tpu_custom_call.1} parent=73 // pred_fallthru
              _
          $region74: #{tpu_custom_call.1} parent=69 // pred_fallthru
            _
          %327 = vnop
        $region70: #{tpu_custom_call.1} parent=27 // pred_fallthru
          _
      $region28: #{tpu_custom_call.1} parent=5 // pred_fallthru
        _
      %p328 = scmp.le.s32.totalorder 1, %s14
      %p329 = scmp.lt.s32.totalorder %s14, 3
      %p330 = pnand %p328, %p329
      %p331 = pneg %p330
      // Predicated region
      $region105: #{tpu_custom_call.1} parent=5 // pred_check
        _
      $region106: #{tpu_custom_call.1} parent=5 // pred_check_branch
        %333 = sbr.rel (%p330) target = $region108
      $region107: #{tpu_custom_call.1} parent=5 // pred_region
        %s334 = ssub.s32 %s14, 1
        %s335 = sand.u32 %s27, 1
        %s336 = sand.u32 %s27, 1
        %s337 = smul.addr %s336, 64
        %s338 = scalar_lea.vmem [#allocation2], %s337
        // Predicated region
        $region109: #{tpu_custom_call.1} parent=107 // pred_check
          %p339 = pneg %p40
        $region110: #{tpu_custom_call.1} parent=107 // pred_check_branch
          %341 = sbr.rel (%p339) target = $region112
        $region111: #{tpu_custom_call.1} parent=107 // pred_region
          _
        $region112: #{tpu_custom_call.1} parent=107 // pred_fallthru
          _
        %s342 = sand.u32 %s53, 1
        %s343 = sand.u32 %s53, 1
        %s344 = smul.addr %s343, 64
        %s345 = scalar_lea.vmem [#allocation3], %s344
        // Predicated region
        $region113: #{tpu_custom_call.1} parent=107 // pred_check
          %p346 = pneg %p66
        $region114: #{tpu_custom_call.1} parent=107 // pred_check_branch
          %348 = sbr.rel (%p346) target = $region116
        $region115: #{tpu_custom_call.1} parent=107 // pred_region
          _
        $region116: #{tpu_custom_call.1} parent=107 // pred_fallthru
          _
        %s349 = sand.u32 %s27, 1
        %s350 = sand.u32 %s27, 1
        %s351 = smul.addr %s350, 64
        %s352 = scalar_lea.vmem [#allocation2], %s351
        %p353 = pneg %p40
        %p354 = pneg %p37
        %s355 = sand.u32 %s53, 1
        %s356 = sand.u32 %s53, 1
        %s357 = smul.addr %s356, 64
        %s358 = scalar_lea.vmem [#allocation3], %s357
        %p359 = pneg %p66
        %p360 = pneg %p63
        %p361 = pneg %p87
        %p362 = pneg %p84
        %p363 = pneg %p108
        %p364 = pneg %p105
        %p365 = pneg %p129
        %p366 = pneg %p126
        %p367 = pneg %p155
        %p368 = pneg %p152
        %s369 = sand.u32 %s142, 1
        %s370 = scalar_lea.sflag [#allocation5], %s369
        %s371 = sand.u32 %s142, 1
        %s372 = smul.addr %s371, 64
        %s373 = scalar_lea.vmem [#allocation4], %s372
        %s374 = smul.u32 8, %s19
        %s375 = smul.u32 8, %s19
        %s376 = smul.u32 8, %s19
        %v377 = vld [vmem:[%s338] sm:$0xff]
        %v378 = vld [vmem:[%s338 + $0x8] sm:$0xff]
        %v379 = vld [vmem:[%s338 + $0x10] sm:$0xff]
        %v380 = vld [vmem:[%s338 + $0x18] sm:$0xff]
        %v381 = vld [vmem:[%s338 + $0x20] sm:$0xff]
        %v382 = vld [vmem:[%s338 + $0x28] sm:$0xff]
        %v383 = vld [vmem:[%s338 + $0x30] sm:$0xff]
        %v384 = vld [vmem:[%s338 + $0x38] sm:$0xff]
        %v385 = vld [vmem:[%s345] sm:$0xff]
        %v386 = vld [vmem:[%s345 + $0x8] sm:$0xff]
        %v387 = vld [vmem:[%s345 + $0x10] sm:$0xff]
        %v388 = vld [vmem:[%s345 + $0x18] sm:$0xff]
        %v389 = vld [vmem:[%s345 + $0x20] sm:$0xff]
        %v390 = vld [vmem:[%s345 + $0x28] sm:$0xff]
        %v391 = vld [vmem:[%s345 + $0x30] sm:$0xff]
        %v392 = vld [vmem:[%s345 + $0x38] sm:$0xff]
        %vm393 = vcmask 64512
        %v394 = vsel %vm393, %v377, 0.0
        %395 = vadd.xlane.f32.xlu0 %v394
        %v396 = vpop.xlane.xlu0 %395
        %v397 = vsel %vm393, %v378, 0.0
        %398 = vadd.xlane.f32.xlu0 %v397
        %v399 = vpop.xlane.xlu0 %398
        %v400 = vsel %vm393, %v379, 0.0
        %401 = vadd.xlane.f32.xlu0 %v400
        %v402 = vpop.xlane.xlu0 %401
        %v403 = vsel %vm393, %v380, 0.0
        %404 = vadd.xlane.f32.xlu0 %v403
        %v405 = vpop.xlane.xlu0 %404
        %v406 = vsel %vm393, %v381, 0.0
        %407 = vadd.xlane.f32.xlu0 %v406
        %v408 = vpop.xlane.xlu0 %407
        %v409 = vsel %vm393, %v382, 0.0
        %410 = vadd.xlane.f32.xlu0 %v409
        %v411 = vpop.xlane.xlu0 %410
        %v412 = vsel %vm393, %v383, 0.0
        %413 = vadd.xlane.f32.xlu0 %v412
        %v414 = vpop.xlane.xlu0 %413
        %v415 = vsel %vm393, %v384, 0.0
        %416 = vadd.xlane.f32.xlu0 %v415
        %v417 = vpop.xlane.xlu0 %416
        %v418 = vsel %vm393, %v385, 0.0
        %419 = vadd.xlane.f32.xlu0 %v418
        %v420 = vpop.xlane.xlu0 %419
        %v421 = vsel %vm393, %v386, 0.0
        %422 = vadd.xlane.f32.xlu0 %v421
        %v423 = vpop.xlane.xlu0 %422
        %v424 = vsel %vm393, %v387, 0.0
        %425 = vadd.xlane.f32.xlu0 %v424
        %v426 = vpop.xlane.xlu0 %425
        %v427 = vsel %vm393, %v388, 0.0
        %428 = vadd.xlane.f32.xlu0 %v427
        %v429 = vpop.xlane.xlu0 %428
        %v430 = vsel %vm393, %v389, 0.0
        %431 = vadd.xlane.f32.xlu0 %v430
        %v432 = vpop.xlane.xlu0 %431
        %v433 = vsel %vm393, %v390, 0.0
        %434 = vadd.xlane.f32.xlu0 %v433
        %v435 = vpop.xlane.xlu0 %434
        %v436 = vsel %vm393, %v391, 0.0
        %437 = vadd.xlane.f32.xlu0 %v436
        %v438 = vpop.xlane.xlu0 %437
        %v439 = vsel %vm393, %v392, 0.0
        %440 = vadd.xlane.f32.xlu0 %v439
        %v441 = vpop.xlane.xlu0 %440
        %v442 = vadd.f32 %v396, %v420
        %v443 = vadd.f32 %v399, %v423
        %v444 = vadd.f32 %v402, %v426
        %v445 = vadd.f32 %v405, %v429
        %v446 = vadd.f32 %v408, %v432
        %v447 = vadd.f32 %v411, %v435
        %v448 = vadd.f32 %v414, %v438
        %v449 = vadd.f32 %v417, %v441
        %v450 = vmul.f32 %v442, 0.0625
        %v451 = vmul.f32 %v443, 0.0625
        %v452 = vmul.f32 %v444, 0.0625
        %v453 = vmul.f32 %v445, 0.0625
        %v454 = vmul.f32 %v446, 0.0625
        %v455 = vmul.f32 %v447, 0.0625
        %v456 = vmul.f32 %v448, 0.0625
        %v457 = vmul.f32 %v449, 0.0625
        %v458 = vsub.f32 %v377, %v450
        %v459 = vsub.f32 %v378, %v451
        %v460 = vsub.f32 %v379, %v452
        %v461 = vsub.f32 %v380, %v453
        %v462 = vsub.f32 %v381, %v454
        %v463 = vsub.f32 %v382, %v455
        %v464 = vsub.f32 %v383, %v456
        %v465 = vsub.f32 %v384, %v457
        %v466 = vsub.f32 %v385, %v450
        %v467 = vsub.f32 %v386, %v451
        %v468 = vsub.f32 %v387, %v452
        %v469 = vsub.f32 %v388, %v453
        %v470 = vsub.f32 %v389, %v454
        %v471 = vsub.f32 %v390, %v455
        %v472 = vsub.f32 %v391, %v456
        %v473 = vsub.f32 %v392, %v457
        %v474 = vmul.f32 %v458, %v458
        %v475 = vmul.f32 %v459, %v459
        %v476 = vmul.f32 %v460, %v460
        %v477 = vmul.f32 %v461, %v461
        %v478 = vmul.f32 %v462, %v462
        %v479 = vmul.f32 %v463, %v463
        %v480 = vmul.f32 %v464, %v464
        %v481 = vmul.f32 %v465, %v465
        %v482 = vsel %vm393, %v474, 0.0
        %483 = vadd.xlane.f32.xlu0 %v482
        %v484 = vpop.xlane.xlu0 %483
        %v485 = vsel %vm393, %v475, 0.0
        %486 = vadd.xlane.f32.xlu0 %v485
        %v487 = vpop.xlane.xlu0 %486
        %v488 = vsel %vm393, %v476, 0.0
        %489 = vadd.xlane.f32.xlu0 %v488
        %v490 = vpop.xlane.xlu0 %489
        %v491 = vsel %vm393, %v477, 0.0
        %492 = vadd.xlane.f32.xlu0 %v491
        %v493 = vpop.xlane.xlu0 %492
        %v494 = vsel %vm393, %v478, 0.0
        %495 = vadd.xlane.f32.xlu0 %v494
        %v496 = vpop.xlane.xlu0 %495
        %v497 = vsel %vm393, %v479, 0.0
        %498 = vadd.xlane.f32.xlu0 %v497
        %v499 = vpop.xlane.xlu0 %498
        %v500 = vsel %vm393, %v480, 0.0
        %501 = vadd.xlane.f32.xlu0 %v500
        %v502 = vpop.xlane.xlu0 %501
        %v503 = vsel %vm393, %v481, 0.0
        %504 = vadd.xlane.f32.xlu0 %v503
        %v505 = vpop.xlane.xlu0 %504
        %v506 = vmul.f32 %v466, %v466
        %v507 = vmul.f32 %v467, %v467
        %v508 = vmul.f32 %v468, %v468
        %v509 = vmul.f32 %v469, %v469
        %v510 = vmul.f32 %v470, %v470
        %v511 = vmul.f32 %v471, %v471
        %v512 = vmul.f32 %v472, %v472
        %v513 = vmul.f32 %v473, %v473
        %v514 = vsel %vm393, %v506, 0.0
        %515 = vadd.xlane.f32.xlu0 %v514
        %v516 = vpop.xlane.xlu0 %515
        %v517 = vsel %vm393, %v507, 0.0
        %518 = vadd.xlane.f32.xlu0 %v517
        %v519 = vpop.xlane.xlu0 %518
        %v520 = vsel %vm393, %v508, 0.0
        %521 = vadd.xlane.f32.xlu0 %v520
        %v522 = vpop.xlane.xlu0 %521
        %v523 = vsel %vm393, %v509, 0.0
        %524 = vadd.xlane.f32.xlu0 %v523
        %v525 = vpop.xlane.xlu0 %524
        %v526 = vsel %vm393, %v510, 0.0
        %527 = vadd.xlane.f32.xlu0 %v526
        %v528 = vpop.xlane.xlu0 %527
        %v529 = vsel %vm393, %v511, 0.0
        %530 = vadd.xlane.f32.xlu0 %v529
        %v531 = vpop.xlane.xlu0 %530
        %v532 = vsel %vm393, %v512, 0.0
        %533 = vadd.xlane.f32.xlu0 %v532
        %v534 = vpop.xlane.xlu0 %533
        %v535 = vsel %vm393, %v513, 0.0
        %536 = vadd.xlane.f32.xlu0 %v535
        %v537 = vpop.xlane.xlu0 %536
        %v538 = vadd.f32 %v484, %v516
        %v539 = vadd.f32 %v487, %v519
        %v540 = vadd.f32 %v490, %v522
        %v541 = vadd.f32 %v493, %v525
        %v542 = vadd.f32 %v496, %v528
        %v543 = vadd.f32 %v499, %v531
        %v544 = vadd.f32 %v502, %v534
        %v545 = vadd.f32 %v505, %v537
        %v546 = vmul.f32 %v538, 0.0625
        %v547 = vmul.f32 %v539, 0.0625
        %v548 = vmul.f32 %v540, 0.0625
        %v549 = vmul.f32 %v541, 0.0625
        %v550 = vmul.f32 %v542, 0.0625
        %v551 = vmul.f32 %v543, 0.0625
        %v552 = vmul.f32 %v544, 0.0625
        %v553 = vmul.f32 %v545, 0.0625
        %v554 = vadd.f32 %v546, 1e-05
        %v555 = vadd.f32 %v547, 1e-05
        %v556 = vadd.f32 %v548, 1e-05
        %v557 = vadd.f32 %v549, 1e-05
        %v558 = vadd.f32 %v550, 1e-05
        %v559 = vadd.f32 %v551, 1e-05
        %v560 = vadd.f32 %v552, 1e-05
        %v561 = vadd.f32 %v553, 1e-05
        %v562 = vrsqrt.pop %v554
        %v563 = vmul.f32 %v562, %v554
        %v564 = vmul.f32 %v563, %v562
        %v565 = vmul.f32 0.5, %v564
        %v566 = vsub.f32 1.5, %v565
        %v567 = vmul.f32 %v562, %v566
        %vm568 = vweird.f32 %v554
        %vm569 = vweird.f32 %v562
        %vm570 = vmor %vm568, %vm569
        %v571 = vsel %vm570, %v562, %v567
        %v572 = vrsqrt.pop %v555
        %v573 = vmul.f32 %v572, %v555
        %v574 = vmul.f32 %v573, %v572
        %v575 = vmul.f32 0.5, %v574
        %v576 = vsub.f32 1.5, %v575
        %v577 = vmul.f32 %v572, %v576
        %vm578 = vweird.f32 %v555
        %vm579 = vweird.f32 %v572
        %vm580 = vmor %vm578, %vm579
        %v581 = vsel %vm580, %v572, %v577
        %v582 = vrsqrt.pop %v556
        %v583 = vmul.f32 %v582, %v556
        %v584 = vmul.f32 %v583, %v582
        %v585 = vmul.f32 0.5, %v584
        %v586 = vsub.f32 1.5, %v585
        %v587 = vmul.f32 %v582, %v586
        %vm588 = vweird.f32 %v556
        %vm589 = vweird.f32 %v582
        %vm590 = vmor %vm588, %vm589
        %v591 = vsel %vm590, %v582, %v587
        %v592 = vrsqrt.pop %v557
        %v593 = vmul.f32 %v592, %v557
        %v594 = vmul.f32 %v593, %v592
        %v595 = vmul.f32 0.5, %v594
        %v596 = vsub.f32 1.5, %v595
        %v597 = vmul.f32 %v592, %v596
        %vm598 = vweird.f32 %v557
        %vm599 = vweird.f32 %v592
        %vm600 = vmor %vm598, %vm599
        %v601 = vsel %vm600, %v592, %v597
        %v602 = vrsqrt.pop %v558
        %v603 = vmul.f32 %v602, %v558
        %v604 = vmul.f32 %v603, %v602
        %v605 = vmul.f32 0.5, %v604
        %v606 = vsub.f32 1.5, %v605
        %v607 = vmul.f32 %v602, %v606
        %vm608 = vweird.f32 %v558
        %vm609 = vweird.f32 %v602
        %vm610 = vmor %vm608, %vm609
        %v611 = vsel %vm610, %v602, %v607
        %v612 = vrsqrt.pop %v559
        %v613 = vmul.f32 %v612, %v559
        %v614 = vmul.f32 %v613, %v612
        %v615 = vmul.f32 0.5, %v614
        %v616 = vsub.f32 1.5, %v615
        %v617 = vmul.f32 %v612, %v616
        %vm618 = vweird.f32 %v559
        %vm619 = vweird.f32 %v612
        %vm620 = vmor %vm618, %vm619
        %v621 = vsel %vm620, %v612, %v617
        %v622 = vrsqrt.pop %v560
        %v623 = vmul.f32 %v622, %v560
        %v624 = vmul.f32 %v623, %v622
        %v625 = vmul.f32 0.5, %v624
        %v626 = vsub.f32 1.5, %v625
        %v627 = vmul.f32 %v622, %v626
        %vm628 = vweird.f32 %v560
        %vm629 = vweird.f32 %v622
        %vm630 = vmor %vm628, %vm629
        %v631 = vsel %vm630, %v622, %v627
        %v632 = vrsqrt.pop %v561
        %v633 = vmul.f32 %v632, %v561
        %v634 = vmul.f32 %v633, %v632
        %v635 = vmul.f32 0.5, %v634
        %v636 = vsub.f32 1.5, %v635
        %v637 = vmul.f32 %v632, %v636
        %vm638 = vweird.f32 %v561
        %vm639 = vweird.f32 %v632
        %vm640 = vmor %vm638, %vm639
        %v641 = vsel %vm640, %v632, %v637
        %v642 = vmul.f32 %v458, %v571
        %v643 = vmul.f32 %v459, %v581
        %v644 = vmul.f32 %v460, %v591
        %v645 = vmul.f32 %v461, %v601
        %v646 = vmul.f32 %v462, %v611
        %v647 = vmul.f32 %v463, %v621
        %v648 = vmul.f32 %v464, %v631
        %v649 = vmul.f32 %v465, %v641
        %v650 = vld [vmem:[%s2] sm:$0x1]
        %v652 = vperm.slane %v650, 0
        %v654 = vmul.f32 %v642, %v652
        %v655 = vmul.f32 %v643, %v652
        %v656 = vmul.f32 %v644, %v652
        %v657 = vmul.f32 %v645, %v652
        %v658 = vmul.f32 %v646, %v652
        %v659 = vmul.f32 %v647, %v652
        %v660 = vmul.f32 %v648, %v652
        %v661 = vmul.f32 %v649, %v652
        %v662 = vld [vmem:[%s3] sm:$0x1]
        %v664 = vperm.slane %v662, 0
        %v666 = vadd.f32 %v654, %v664
        %v667 = vadd.f32 %v655, %v664
        %v668 = vadd.f32 %v656, %v664
        %v669 = vadd.f32 %v657, %v664
        %v670 = vadd.f32 %v658, %v664
        %v671 = vadd.f32 %v659, %v664
        %v672 = vadd.f32 %v660, %v664
        %v673 = vadd.f32 %v661, %v664
        %v674 = vmul.f32 %v466, %v571
        %v675 = vmul.f32 %v467, %v581
        %v676 = vmul.f32 %v468, %v591
        %v677 = vmul.f32 %v469, %v601
        %v678 = vmul.f32 %v470, %v611
        %v679 = vmul.f32 %v471, %v621
        %v680 = vmul.f32 %v472, %v631
        %v681 = vmul.f32 %v473, %v641
        %s682 = scalar_lea.vmem %s2, 1
        %v683 = vld [vmem:[%s682] sm:$0x1]
        %v685 = vperm.slane %v683, 0
        %v687 = vmul.f32 %v674, %v685
        %v688 = vmul.f32 %v675, %v685
        %v689 = vmul.f32 %v676, %v685
        %v690 = vmul.f32 %v677, %v685
        %v691 = vmul.f32 %v678, %v685
        %v692 = vmul.f32 %v679, %v685
        %v693 = vmul.f32 %v680, %v685
        %v694 = vmul.f32 %v681, %v685
        %s695 = scalar_lea.vmem %s3, 1
        %v696 = vld [vmem:[%s695] sm:$0x1]
        %v698 = vperm.slane %v696, 0
        %v700 = vadd.f32 %v687, %v698
        %v701 = vadd.f32 %v688, %v698
        %v702 = vadd.f32 %v689, %v698
        %v703 = vadd.f32 %v690, %v698
        %v704 = vadd.f32 %v691, %v698
        %v705 = vadd.f32 %v692, %v698
        %v706 = vadd.f32 %v693, %v698
        %v707 = vadd.f32 %v694, %v698
        %v708 = vld [vmem:[%s4] sm:$0xff]
        %s709 = scalar_lea.vmem %s4, 8
        %v710 = vld [vmem:[%s709] sm:$0xff]
        %v712 = vsel %vm393, %v700, 0
        %v715 = vsel %vm393, %v701, 0
        %v718 = vsel %vm393, %v702, 0
        %v721 = vsel %vm393, %v703, 0
        %v724 = vsel %vm393, %v704, 0
        %v727 = vsel %vm393, %v705, 0
        %v730 = vsel %vm393, %v706, 0
        %v733 = vsel %vm393, %v707, 0
        %735 = vmatpush.msra.mxu0 0.0
        %736 = vmatpush.msra.mxu0 0.0
        %737 = vmatpush.msra.mxu0 0.0
        %738 = vmatpush.msra.mxu0 0.0
        %739 = vmatpush.msra.mxu0 0.0
        %740 = vmatpush.msra.mxu0 0.0
        %741 = vmatpush.msra.mxu0 0.0
        %742 = vmatpush.msra.mxu0 0.0
        %743 = vmatpush.msra.mxu0 0.0
        %744 = vmatpush.msra.mxu0 0.0
        %745 = vmatpush.msra.mxu0 0.0
        %746 = vmatpush.msra.mxu0 0.0
        %747 = vmatpush.msra.mxu0 0.0
        %748 = vmatpush.msra.mxu0 0.0
        %749 = vmatpush.msra.mxu0 0.0
        %750 = vmatpush.msra.mxu0 %v710
        %751 = vmatmul.f32.gmra.mxu0 %v712
        %v752 = vpop.f32.mrf.mxu0
        %v753 = vadd.f32 0.0, %v752
        %754 = vmatmul.f32.gmra.mxu0 %v715
        %v755 = vpop.f32.mrf.mxu0
        %v756 = vadd.f32 0.0, %v755
        %757 = vmatmul.f32.gmra.mxu0 %v718
        %v758 = vpop.f32.mrf.mxu0
        %v759 = vadd.f32 0.0, %v758
        %760 = vmatmul.f32.gmra.mxu0 %v721
        %v761 = vpop.f32.mrf.mxu0
        %v762 = vadd.f32 0.0, %v761
        %763 = vmatmul.f32.gmra.mxu0 %v724
        %v764 = vpop.f32.mrf.mxu0
        %v765 = vadd.f32 0.0, %v764
        %766 = vmatmul.f32.gmra.mxu0 %v727
        %v767 = vpop.f32.mrf.mxu0
        %v768 = vadd.f32 0.0, %v767
        %769 = vmatmul.f32.gmra.mxu0 %v730
        %v770 = vpop.f32.mrf.mxu0
        %v771 = vadd.f32 0.0, %v770
        %772 = vmatmul.f32.gmra.mxu0 %v733
        %v773 = vpop.f32.mrf.mxu0
        %v774 = vadd.f32 0.0, %v773
        %775 = vdwg.mxu0
        %v777 = vsel %vm393, %v666, 0
        %v780 = vsel %vm393, %v667, 0
        %v783 = vsel %vm393, %v668, 0
        %v786 = vsel %vm393, %v669, 0
        %v789 = vsel %vm393, %v670, 0
        %v792 = vsel %vm393, %v671, 0
        %v795 = vsel %vm393, %v672, 0
        %v798 = vsel %vm393, %v673, 0
        %800 = vmatpush.msra.mxu0 0.0
        %801 = vmatpush.msra.mxu0 0.0
        %802 = vmatpush.msra.mxu0 0.0
        %803 = vmatpush.msra.mxu0 0.0
        %804 = vmatpush.msra.mxu0 0.0
        %805 = vmatpush.msra.mxu0 0.0
        %806 = vmatpush.msra.mxu0 0.0
        %807 = vmatpush.msra.mxu0 0.0
        %808 = vmatpush.msra.mxu0 0.0
        %809 = vmatpush.msra.mxu0 0.0
        %810 = vmatpush.msra.mxu0 0.0
        %811 = vmatpush.msra.mxu0 0.0
        %812 = vmatpush.msra.mxu0 0.0
        %813 = vmatpush.msra.mxu0 0.0
        %814 = vmatpush.msra.mxu0 0.0
        %815 = vmatpush.msra.mxu0 %v708
        %816 = vmatmul.f32.gmra.mxu0 %v777
        %v817 = vpop.f32.mrf.mxu0
        %v818 = vadd.f32 %v753, %v817
        %819 = vmatmul.f32.gmra.mxu0 %v780
        %v820 = vpop.f32.mrf.mxu0
        %v821 = vadd.f32 %v756, %v820
        %822 = vmatmul.f32.gmra.mxu0 %v783
        %v823 = vpop.f32.mrf.mxu0
        %v824 = vadd.f32 %v759, %v823
        %825 = vmatmul.f32.gmra.mxu0 %v786
        %v826 = vpop.f32.mrf.mxu0
        %v827 = vadd.f32 %v762, %v826
        %828 = vmatmul.f32.gmra.mxu0 %v789
        %v829 = vpop.f32.mrf.mxu0
        %v830 = vadd.f32 %v765, %v829
        %831 = vmatmul.f32.gmra.mxu0 %v792
        %v832 = vpop.f32.mrf.mxu0
        %v833 = vadd.f32 %v768, %v832
        %834 = vmatmul.f32.gmra.mxu0 %v795
        %v835 = vpop.f32.mrf.mxu0
        %v836 = vadd.f32 %v771, %v835
        %837 = vmatmul.f32.gmra.mxu0 %v798
        %v838 = vpop.f32.mrf.mxu0
        %v839 = vadd.f32 %v774, %v838
        %840 = vdwg.mxu0
        %841 = vst [vmem:[%s373] sm:$0xff] %v818
        %842 = vst [vmem:[%s373 + $0x8] sm:$0xff] %v821
        %843 = vst [vmem:[%s373 + $0x10] sm:$0xff] %v824
        %844 = vst [vmem:[%s373 + $0x18] sm:$0xff] %v827
        %845 = vst [vmem:[%s373 + $0x20] sm:$0xff] %v830
        %846 = vst [vmem:[%s373 + $0x28] sm:$0xff] %v833
        %847 = vst [vmem:[%s373 + $0x30] sm:$0xff] %v836
        %848 = vst [vmem:[%s373 + $0x38] sm:$0xff] %v839
        %s849 = sand.u32 %s142, 1
        %s850 = scalar_lea.sflag [#allocation5], %s849
        %s851 = sand.u32 %s142, 1
        %s852 = smul.addr %s851, 64
        %s853 = scalar_lea.vmem [#allocation4], %s852
        // Predicated region
        $region117: #{tpu_custom_call.1} parent=107 // pred_check
          %p854 = pneg %p152
        $region118: #{tpu_custom_call.1} parent=107 // pred_check_branch
          %856 = sbr.rel (%p854) target = $region120
        $region119: #{tpu_custom_call.1} parent=107 // pred_region
          %s857 = smul.u32 8, %s19
          %859 = vsyncadd %s850, 0
          %s860 = smul.addr %s857, 8
          %s861 = scalar_lea.hbm %s5, %s860
          %s862 = sshll.u32 %s853, 4
          %s863 = int_to_ptr.vmem [resolvable:$true] %s862
          %s864 = sshll.u32 %s861, 4
          %s865 = int_to_ptr.hbm [resolvable:$true] %s864
          %870 = dma.vmem_to_hbm [thread:$0]  %s863, 1024, %s865, %s850, 128, 128, 8
        $region120: #{tpu_custom_call.1} parent=107 // pred_fallthru
          _
      $region108: #{tpu_custom_call.1} parent=5 // pred_fallthru
        _
      %p871 = scmp.le.s32.totalorder 2, %s14
      // Predicated region
      $region121: #{tpu_custom_call.1} parent=5 // pred_check
        %p872 = pneg %p871
      $region122: #{tpu_custom_call.1} parent=5 // pred_check_branch
        %874 = sbr.rel (%p872) target = $region124
      $region123: #{tpu_custom_call.1} parent=5 // pred_region
        %s875 = ssub.s32 %s14, 2
        // Predicated region
        $region125: #{tpu_custom_call.1} parent=123 // pred_check
          %p876 = pneg %p158
        $region126: #{tpu_custom_call.1} parent=123 // pred_check_branch
          %878 = sbr.rel (%p876) target = $region128
        $region127: #{tpu_custom_call.1} parent=123 // pred_region
          %s879 = sand.u32 %s143, 1
          %s880 = scalar_lea.sflag [#allocation5], %s879
          %s881 = sand.u32 %s143, 1
          %s882 = smul.addr %s881, 64
          %s883 = scalar_lea.vmem [#allocation4], %s882
          %885 = dma.done %s880, 1024
        $region128: #{tpu_custom_call.1} parent=123 // pred_fallthru
          _
      $region124: #{tpu_custom_call.1} parent=5 // pred_fallthru
        _
    $region6: #{tpu_custom_call.1} parent=1 // loop_footer
      %s18 = sadd.s32 1, %s14
    $region7: #{tpu_custom_call.1} parent=1 // loop_footer_branch
      %13 = sbr.rel target = $region3
    $region8: #{tpu_custom_call.1} parent=1 // loop_exit
      _
    %886 = vsyncpa [#allocation5], 1
    %s887 = scalar_lea.sflag [#allocation5], 1
    %888 = vsyncpa %s887, 1

// kernel: tpu_custom_call.1
$region0: #{tpu_custom_call.1}
  #allocation0 [shape = 'u32[]', space=smem, size = 0x4, offset = 0x4, fixed_abs, tag = 'smem constant byte address 0x4 - core index']
  #allocation1 [shape = 'u32[72,128]{1,0:T(1,128)}', space=vmem, size = 0x9000, scoped, tag = 'internal scratch']
  %s0 = inlined_call_operand.vmem [shape: f32[16,2,8,8], index: 0, kind: input, shape index: {}]
  %s1 = inlined_call_operand.vmem [shape: f32[16,2,8,8], index: 1, kind: input, shape index: {}]
  %s2 = inlined_call_operand.vmem [shape: f32[2,1,8], index: 2, kind: input, shape index: {}]
  %s3 = inlined_call_operand.vmem [shape: f32[2,1,8], index: 3, kind: input, shape index: {}]
  %s4 = inlined_call_operand.vmem [shape: f32[2,8,128], index: 4, kind: input, shape index: {}]
  %s5 = inlined_call_operand.hbm [shape: f32[128,128], index: 5, kind: output, shape index: {}]
  %s6 = sld [smem:[#allocation0]]
  $region129: #{tpu_custom_call.1} parent=0
    _
  %s8 = ssub.s32 1, %s6
  %s9 = scalar_select 0, %s8, %s6
  $region1: #{tpu_custom_call.1} parent=0
    #allocation2 [shape = 'u8[65536]{0}', space=vmem, size = 0x10000, scoped, tag = 'input window, operand 0']
    #allocation3 [shape = 'u8[65536]{0}', space=vmem, size = 0x10000, scoped, tag = 'input window, operand 1']
    #allocation4 [shape = 'u8[65536]{0}', space=vmem, size = 0x10000, scoped, tag = 'output window, operand 0']
    #allocation5 [shape = 's32[2]{0}', space=sflag, size = 0x8, scoped, tag = 'scoped memory for tpu_custom_call.1']
    %10 = vsyncpa [#allocation5], 0
    %s11 = scalar_lea.sflag [#allocation5], 1
    %12 = vsyncpa %s11, 0
    loop: start=0, step=1, limit=4
    $region2: #{tpu_custom_call.1} parent=1 // loop_pre_header
      _
    $region3: #{tpu_custom_call.1} parent=1 // loop_header
      %s14 = sphi 0, %s18
      %p15 = scmp.ge.s32.totalorder %s14, 4
      %s24 = sphi 0, %s26
      %s27 = sphi 0, %s24
      %s28 = sphi 0, %s27
      %s44 = sphi 0, %s28
      %s50 = sphi 0, %s52
      %s53 = sphi 0, %s50
      %s54 = sphi 0, %s53
      %s70 = sphi 0, %s54
      %s74 = sphi 0, %s74
      %s76 = sphi 0, %s74
      %s77 = sphi 0, %s76
      %s91 = sphi 0, %s77
      %s95 = sphi 0, %s95
      %s97 = sphi 0, %s95
      %s98 = sphi 0, %s97
      %s112 = sphi 0, %s98
      %s116 = sphi 0, %s116
      %s118 = sphi 0, %s116
      %s119 = sphi 0, %s118
      %s133 = sphi 0, %s119
      %s139 = sphi 0, %s141
      %s142 = sphi 0, %s139
      %s143 = sphi 0, %s142
      %s159 = sphi 0, %s143
    $region4: #{tpu_custom_call.1} parent=1 // loop_header_branch
      %17 = sbr.rel (%p15) target = $region8
    $region5: #{tpu_custom_call.1} parent=1 // loop_body
      %s19 = ssub.s32 %s14, 1
      %s20 = ssub.s32 %s14, 2
      %s21 = sadd.s32 %s14, 1
      %s22 = ssub.s32 %s14, %s21
      %p23 = scmp.eq.s32.totalorder %s22, 0
      %s25 = sadd.s32 %s24, 1
      %s26 = scalar_select %p23, %s24, %s25
      %p29 = pneg %p23
      %p30 = scmp.eq.s32.totalorder %s14, 1
      %p31 = por %p29, %p30
      %p32 = scmp.ne.s32.totalorder %s24, %s27
      %p33 = scmp.eq.s32.totalorder %s14, 0
      %p34 = por %p32, %p33
      %p35 = scmp.ne.s32.totalorder %s24, %s27
      %p36 = scmp.eq.s32.totalorder %s19, 1
      %p37 = por %p35, %p36
      %p38 = scmp.ne.s32.totalorder %s27, %s28
      %p39 = scmp.eq.s32.totalorder %s19, 0
      %p40 = por %p38, %p39
      %p41 = scmp.ne.s32.totalorder %s27, %s28
      %p42 = scmp.eq.s32.totalorder %s20, 1
      %p43 = por %p41, %p42
      %p45 = scmp.ne.s32.totalorder %s28, %s44
      %p46 = scmp.eq.s32.totalorder %s20, 0
      %p47 = por %p45, %p46
      %s48 = ssub.s32 %s14, %s21
      %p49 = scmp.eq.s32.totalorder %s48, 0
      %s51 = sadd.s32 %s50, 1
      %s52 = scalar_select %p49, %s50, %s51
      %p55 = pneg %p49
      %p56 = scmp.eq.s32.totalorder %s14, 1
      %p57 = por %p55, %p56
      %p58 = scmp.ne.s32.totalorder %s50, %s53
      %p59 = scmp.eq.s32.totalorder %s14, 0
      %p60 = por %p58, %p59
      %p61 = scmp.ne.s32.totalorder %s50, %s53
      %p62 = scmp.eq.s32.totalorder %s19, 1
      %p63 = por %p61, %p62
      %p64 = scmp.ne.s32.totalorder %s53, %s54
      %p65 = scmp.eq.s32.totalorder %s19, 0
      %p66 = por %p64, %p65
      %p67 = scmp.ne.s32.totalorder %s53, %s54
      %p68 = scmp.eq.s32.totalorder %s20, 1
      %p69 = por %p67, %p68
      %p71 = scmp.ne.s32.totalorder %s54, %s70
      %p72 = scmp.eq.s32.totalorder %s20, 0
      %p73 = por %p71, %p72
      %s75 = sadd.s32 %s74, 1
      %p78 = scmp.eq.s32.totalorder %s14, 1
      %p79 = scmp.ne.s32.totalorder %s74, %s76
      %p80 = scmp.eq.s32.totalorder %s14, 0
      %p81 = por %p79, %p80
      %p82 = scmp.ne.s32.totalorder %s74, %s76
      %p83 = scmp.eq.s32.totalorder %s19, 1
      %p84 = por %p82, %p83
      %p85 = scmp.ne.s32.totalorder %s76, %s77
      %p86 = scmp.eq.s32.totalorder %s19, 0
      %p87 = por %p85, %p86
      %p88 = scmp.ne.s32.totalorder %s76, %s77
      %p89 = scmp.eq.s32.totalorder %s20, 1
      %p90 = por %p88, %p89
      %p92 = scmp.ne.s32.totalorder %s77, %s91
      %p93 = scmp.eq.s32.totalorder %s20, 0
      %p94 = por %p92, %p93
      %s96 = sadd.s32 %s95, 1
      %p99 = scmp.eq.s32.totalorder %s14, 1
      %p100 = scmp.ne.s32.totalorder %s95, %s97
      %p101 = scmp.eq.s32.totalorder %s14, 0
      %p102 = por %p100, %p101
      %p103 = scmp.ne.s32.totalorder %s95, %s97
      %p104 = scmp.eq.s32.totalorder %s19, 1
      %p105 = por %p103, %p104
      %p106 = scmp.ne.s32.totalorder %s97, %s98
      %p107 = scmp.eq.s32.totalorder %s19, 0
      %p108 = por %p106, %p107
      %p109 = scmp.ne.s32.totalorder %s97, %s98
      %p110 = scmp.eq.s32.totalorder %s20, 1
      %p111 = por %p109, %p110
      %p113 = scmp.ne.s32.totalorder %s98, %s112
      %p114 = scmp.eq.s32.totalorder %s20, 0
      %p115 = por %p113, %p114
      %s117 = sadd.s32 %s116, 1
      %p120 = scmp.eq.s32.totalorder %s14, 1
      %p121 = scmp.ne.s32.totalorder %s116, %s118
      %p122 = scmp.eq.s32.totalorder %s14, 0
      %p123 = por %p121, %p122
      %p124 = scmp.ne.s32.totalorder %s116, %s118
      %p125 = scmp.eq.s32.totalorder %s19, 1
      %p126 = por %p124, %p125
      %p127 = scmp.ne.s32.totalorder %s118, %s119
      %p128 = scmp.eq.s32.totalorder %s19, 0
      %p129 = por %p127, %p128
      %p130 = scmp.ne.s32.totalorder %s118, %s119
      %p131 = scmp.eq.s32.totalorder %s20, 1
      %p132 = por %p130, %p131
      %p134 = scmp.ne.s32.totalorder %s119, %s133
      %p135 = scmp.eq.s32.totalorder %s20, 0
      %p136 = por %p134, %p135
      %s137 = ssub.s32 %s14, %s21
      %p138 = scmp.eq.s32.totalorder %s137, 0
      %s140 = sadd.s32 %s139, 1
      %s141 = scalar_select %p138, %s139, %s140
      %p144 = pneg %p138
      %p145 = scmp.eq.s32.totalorder %s14, 1
      %p146 = por %p144, %p145
      %p147 = scmp.ne.s32.totalorder %s139, %s142
      %p148 = scmp.eq.s32.totalorder %s14, 0
      %p149 = por %p147, %p148
      %p150 = scmp.ne.s32.totalorder %s139, %s142
      %p151 = scmp.eq.s32.totalorder %s19, 1
      %p152 = por %p150, %p151
      %p153 = scmp.ne.s32.totalorder %s142, %s143
      %p154 = scmp.eq.s32.totalorder %s19, 0
      %p155 = por %p153, %p154
      %p156 = scmp.ne.s32.totalorder %s142, %s143
      %p157 = scmp.eq.s32.totalorder %s20, 1
      %p158 = por %p156, %p157
      %p160 = scmp.ne.s32.totalorder %s143, %s159
      %p161 = scmp.eq.s32.totalorder %s20, 0
      %p162 = por %p160, %p161
      %p163 = scmp.le.s32.totalorder 1, %s14
      %p164 = scmp.lt.s32.totalorder %s14, 3
      %p165 = pnand %p163, %p164
      %p166 = pneg %p165
      // Predicated region
      $region9: #{tpu_custom_call.1} parent=5 // pred_check
        _
      $region10: #{tpu_custom_call.1} parent=5 // pred_check_branch
        %168 = sbr.rel (%p165) target = $region12
      $region11: #{tpu_custom_call.1} parent=5 // pred_region
        %s169 = ssub.s32 %s14, 1
        // Predicated region
        $region13: #{tpu_custom_call.1} parent=11 // pred_check
          %p170 = pneg %p87
        $region14: #{tpu_custom_call.1} parent=11 // pred_check_branch
          %172 = sbr.rel (%p170) target = $region16
        $region15: #{tpu_custom_call.1} parent=11 // pred_region
          _
        $region16: #{tpu_custom_call.1} parent=11 // pred_fallthru
          _
        // Predicated region
        $region17: #{tpu_custom_call.1} parent=11 // pred_check
          %p173 = pneg %p108
        $region18: #{tpu_custom_call.1} parent=11 // pred_check_branch
          %175 = sbr.rel (%p173) target = $region20
        $region19: #{tpu_custom_call.1} parent=11 // pred_region
          _
        $region20: #{tpu_custom_call.1} parent=11 // pred_fallthru
          _
        // Predicated region
        $region21: #{tpu_custom_call.1} parent=11 // pred_check
          %p176 = pneg %p129
        $region22: #{tpu_custom_call.1} parent=11 // pred_check_branch
          %178 = sbr.rel (%p176) target = $region24
        $region23: #{tpu_custom_call.1} parent=11 // pred_region
          _
        $region24: #{tpu_custom_call.1} parent=11 // pred_fallthru
          _
      $region12: #{tpu_custom_call.1} parent=5 // pred_fallthru
        _
      %p179 = scmp.lt.s32.totalorder %s14, 2
      // Predicated region
      $region25: #{tpu_custom_call.1} parent=5 // pred_check
        %p180 = pneg %p179
      $region26: #{tpu_custom_call.1} parent=5 // pred_check_branch
        %182 = sbr.rel (%p180) target = $region28
      $region27: #{tpu_custom_call.1} parent=5 // pred_region
        // Predicated region
        $region29: #{tpu_custom_call.1} parent=27 // pred_check
          %p183 = pneg %p34
        $region30: #{tpu_custom_call.1} parent=27 // pred_check_branch
          %185 = sbr.rel (%p183) target = $region32
        $region31: #{tpu_custom_call.1} parent=27 // pred_region
          %s186 = sand.u32 %s24, 1
          %s187 = sand.u32 %s24, 1
          %s188 = smul.addr %s187, 64
          %s189 = scalar_lea.vmem [#allocation2], %s188
          %s190 = smul.u32 8, %s14
          %s191 = smul.addr %s190, 2
          %s192 = smul.addr %s191, 8
          %s193 = scalar_lea.vmem %s0, %s192
          // Predicated region
          $region33: #{tpu_custom_call.1} parent=31 // pred_check
            _
          $region34: #{tpu_custom_call.1} parent=31 // pred_check_branch
            %195 = sbr.rel (0) target = $region36
          $region35: #{tpu_custom_call.1} parent=31 // pred_region
            // Predicated region
            $region37: #{tpu_custom_call.1} parent=35 // pred_check
              _
            $region38: #{tpu_custom_call.1} parent=35 // pred_check_branch
              %197 = sbr.rel (0) target = $region40
            $region39: #{tpu_custom_call.1} parent=35 // pred_region
              // Predicated region
              $region52: #{tpu_custom_call.1} parent=39 // pred_check
                _
              $region53: #{tpu_custom_call.1} parent=39 // pred_check_branch
                %227 = sbr.rel (0) target = $region55
              $region54: #{tpu_custom_call.1} parent=39 // pred_region
                loop: start=0, step=1, limit=1
                $region56: #{tpu_custom_call.1} parent=54 // loop_pre_header
                  _
                $region57: #{tpu_custom_call.1} parent=54 // loop_header
                  %s229 = sphi 0, %s233
                  %p230 = scmp.ge.s32.totalorder %s229, 1
                  %s234 = sphi %s193, %s193
                  %s235 = sphi %s189, %s189
                $region58: #{tpu_custom_call.1} parent=54 // loop_header_branch
                  %232 = sbr.rel (%p230) target = $region62
                $region59: #{tpu_custom_call.1} parent=54 // loop_body
                  %v236 = vld [vmem:[%s234] sm:$0xff]
                  %237 = vst [vmem:[%s235] sm:$0xff] %v236
                  %v238 = vld [vmem:[%s234 + $0x10] sm:$0xff]
                  %239 = vst [vmem:[%s235 + $0x8] sm:$0xff] %v238
                  %v240 = vld [vmem:[%s234 + $0x20] sm:$0xff]
                  %241 = vst [vmem:[%s235 + $0x10] sm:$0xff] %v240
                  %v242 = vld [vmem:[%s234 + $0x30] sm:$0xff]
                  %243 = vst [vmem:[%s235 + $0x18] sm:$0xff] %v242
                  %v244 = vld [vmem:[%s234 + $0x40] sm:$0xff]
                  %245 = vst [vmem:[%s235 + $0x20] sm:$0xff] %v244
                  %v246 = vld [vmem:[%s234 + $0x50] sm:$0xff]
                  %247 = vst [vmem:[%s235 + $0x28] sm:$0xff] %v246
                  %v248 = vld [vmem:[%s234 + $0x60] sm:$0xff]
                  %249 = vst [vmem:[%s235 + $0x30] sm:$0xff] %v248
                  %v250 = vld [vmem:[%s234 + $0x70] sm:$0xff]
                  %251 = vst [vmem:[%s235 + $0x38] sm:$0xff] %v250
                $region60: #{tpu_custom_call.1} parent=54 // loop_footer
                  %s233 = sadd.s32 1, %s229
                $region61: #{tpu_custom_call.1} parent=54 // loop_footer_branch
                  %228 = sbr.rel target = $region57
                $region62: #{tpu_custom_call.1} parent=54 // loop_exit
                  _
              $region55: #{tpu_custom_call.1} parent=39 // pred_fallthru
                _
              // Predicated region
              $region63: #{tpu_custom_call.1} parent=39 // pred_check
                _
              $region64: #{tpu_custom_call.1} parent=39 // pred_check_branch
                %253 = sbr.rel target = $region66
              $region65: #{tpu_custom_call.1} parent=39 // pred_region
                _
              $region66: #{tpu_custom_call.1} parent=39 // pred_fallthru
                _
            $region40: #{tpu_custom_call.1} parent=35 // pred_fallthru
              _
            // Predicated region
            $region41: #{tpu_custom_call.1} parent=35 // pred_check
              _
            $region42: #{tpu_custom_call.1} parent=35 // pred_check_branch
              %199 = sbr.rel target = $region44
            $region43: #{tpu_custom_call.1} parent=35 // pred_region
              %s201 = ssub.s32 256, 1
              loop: start=0, step=1, limit=1
              $region45: #{tpu_custom_call.1} parent=43 // loop_pre_header
                _
              $region46: #{tpu_custom_call.1} parent=43 // loop_header
                %s203 = sphi 0, %s207
                %p204 = scmp.ge.s32.totalorder %s203, 1
                %s208 = sphi %s193, %s193
                %s209 = sphi %s189, %s189
              $region47: #{tpu_custom_call.1} parent=43 // loop_header_branch
                %206 = sbr.rel (%p204) target = $region51
              $region48: #{tpu_custom_call.1} parent=43 // loop_body
                %v210 = vld [vmem:[%s208] sm:%s201]
                %211 = vst [vmem:[%s209] sm:%s201] %v210
                %v212 = vld [vmem:[%s208 + $0x10] sm:%s201]
                %213 = vst [vmem:[%s209 + $0x8] sm:%s201] %v212
                %v214 = vld [vmem:[%s208 + $0x20] sm:%s201]
                %215 = vst [vmem:[%s209 + $0x10] sm:%s201] %v214
                %v216 = vld [vmem:[%s208 + $0x30] sm:%s201]
                %217 = vst [vmem:[%s209 + $0x18] sm:%s201] %v216
                %v218 = vld [vmem:[%s208 + $0x40] sm:%s201]
                %219 = vst [vmem:[%s209 + $0x20] sm:%s201] %v218
                %v220 = vld [vmem:[%s208 + $0x50] sm:%s201]
                %221 = vst [vmem:[%s209 + $0x28] sm:%s201] %v220
                %v222 = vld [vmem:[%s208 + $0x60] sm:%s201]
                %223 = vst [vmem:[%s209 + $0x30] sm:%s201] %v222
                %v224 = vld [vmem:[%s208 + $0x70] sm:%s201]
                %225 = vst [vmem:[%s209 + $0x38] sm:%s201] %v224
              $region49: #{tpu_custom_call.1} parent=43 // loop_footer
                %s207 = sadd.s32 1, %s203
              $region50: #{tpu_custom_call.1} parent=43 // loop_footer_branch
                %202 = sbr.rel target = $region46
              $region51: #{tpu_custom_call.1} parent=43 // loop_exit
                _
            $region44: #{tpu_custom_call.1} parent=35 // pred_fallthru
              _
          $region36: #{tpu_custom_call.1} parent=31 // pred_fallthru
            _
          %254 = vnop
        $region32: #{tpu_custom_call.1} parent=27 // pred_fallthru
          _
        // Predicated region
        $region67: #{tpu_custom_call.1} parent=27 // pred_check
          %p255 = pneg %p60
        $region68: #{tpu_custom_call.1} parent=27 // pred_check_branch
          %257 = sbr.rel (%p255) target = $region70
        $region69: #{tpu_custom_call.1} parent=27 // pred_region
          %s258 = sand.u32 %s50, 1
          %s259 = sand.u32 %s50, 1
          %s260 = smul.addr %s259, 64
          %s261 = scalar_lea.vmem [#allocation3], %s260
          %s262 = smul.u32 8, %s14
          %s263 = smul.addr %s262, 2
          %s264 = sadd.s32 1, %s263
          %s265 = smul.addr %s264, 8
          %s266 = scalar_lea.vmem %s1, %s265
          // Predicated region
          $region71: #{tpu_custom_call.1} parent=69 // pred_check
            _
          $region72: #{tpu_custom_call.1} parent=69 // pred_check_branch
            %268 = sbr.rel (0) target = $region74
          $region73: #{tpu_custom_call.1} parent=69 // pred_region
            // Predicated region
            $region75: #{tpu_custom_call.1} parent=73 // pred_check
              _
            $region76: #{tpu_custom_call.1} parent=73 // pred_check_branch
              %270 = sbr.rel (0) target = $region78
            $region77: #{tpu_custom_call.1} parent=73 // pred_region
              // Predicated region
              $region90: #{tpu_custom_call.1} parent=77 // pred_check
                _
              $region91: #{tpu_custom_call.1} parent=77 // pred_check_branch
                %300 = sbr.rel (0) target = $region93
              $region92: #{tpu_custom_call.1} parent=77 // pred_region
                loop: start=0, step=1, limit=1
                $region94: #{tpu_custom_call.1} parent=92 // loop_pre_header
                  _
                $region95: #{tpu_custom_call.1} parent=92 // loop_header
                  %s302 = sphi 0, %s306
                  %p303 = scmp.ge.s32.totalorder %s302, 1
                  %s307 = sphi %s266, %s266
                  %s308 = sphi %s261, %s261
                $region96: #{tpu_custom_call.1} parent=92 // loop_header_branch
                  %305 = sbr.rel (%p303) target = $region100
                $region97: #{tpu_custom_call.1} parent=92 // loop_body
                  %v309 = vld [vmem:[%s307] sm:$0xff]
                  %310 = vst [vmem:[%s308] sm:$0xff] %v309
                  %v311 = vld [vmem:[%s307 + $0x10] sm:$0xff]
                  %312 = vst [vmem:[%s308 + $0x8] sm:$0xff] %v311
                  %v313 = vld [vmem:[%s307 + $0x20] sm:$0xff]
                  %314 = vst [vmem:[%s308 + $0x10] sm:$0xff] %v313
                  %v315 = vld [vmem:[%s307 + $0x30] sm:$0xff]
                  %316 = vst [vmem:[%s308 + $0x18] sm:$0xff] %v315
                  %v317 = vld [vmem:[%s307 + $0x40] sm:$0xff]
                  %318 = vst [vmem:[%s308 + $0x20] sm:$0xff] %v317
                  %v319 = vld [vmem:[%s307 + $0x50] sm:$0xff]
                  %320 = vst [vmem:[%s308 + $0x28] sm:$0xff] %v319
                  %v321 = vld [vmem:[%s307 + $0x60] sm:$0xff]
                  %322 = vst [vmem:[%s308 + $0x30] sm:$0xff] %v321
                  %v323 = vld [vmem:[%s307 + $0x70] sm:$0xff]
                  %324 = vst [vmem:[%s308 + $0x38] sm:$0xff] %v323
                $region98: #{tpu_custom_call.1} parent=92 // loop_footer
                  %s306 = sadd.s32 1, %s302
                $region99: #{tpu_custom_call.1} parent=92 // loop_footer_branch
                  %301 = sbr.rel target = $region95
                $region100: #{tpu_custom_call.1} parent=92 // loop_exit
                  _
              $region93: #{tpu_custom_call.1} parent=77 // pred_fallthru
                _
              // Predicated region
              $region101: #{tpu_custom_call.1} parent=77 // pred_check
                _
              $region102: #{tpu_custom_call.1} parent=77 // pred_check_branch
                %326 = sbr.rel target = $region104
              $region103: #{tpu_custom_call.1} parent=77 // pred_region
                _
              $region104: #{tpu_custom_call.1} parent=77 // pred_fallthru
                _
            $region78: #{tpu_custom_call.1} parent=73 // pred_fallthru
              _
            // Predicated region
            $region79: #{tpu_custom_call.1} parent=73 // pred_check
              _
            $region80: #{tpu_custom_call.1} parent=73 // pred_check_branch
              %272 = sbr.rel target = $region82
            $region81: #{tpu_custom_call.1} parent=73 // pred_region
              %s274 = ssub.s32 256, 1
              loop: start=0, step=1, limit=1
              $region83: #{tpu_custom_call.1} parent=81 // loop_pre_header
                _
              $region84: #{tpu_custom_call.1} parent=81 // loop_header
                %s276 = sphi 0, %s280
                %p277 = scmp.ge.s32.totalorder %s276, 1
                %s281 = sphi %s266, %s266
                %s282 = sphi %s261, %s261
              $region85: #{tpu_custom_call.1} parent=81 // loop_header_branch
                %279 = sbr.rel (%p277) target = $region89
              $region86: #{tpu_custom_call.1} parent=81 // loop_body
                %v283 = vld [vmem:[%s281] sm:%s274]
                %284 = vst [vmem:[%s282] sm:%s274] %v283
                %v285 = vld [vmem:[%s281 + $0x10] sm:%s274]
                %286 = vst [vmem:[%s282 + $0x8] sm:%s274] %v285
                %v287 = vld [vmem:[%s281 + $0x20] sm:%s274]
                %288 = vst [vmem:[%s282 + $0x10] sm:%s274] %v287
                %v289 = vld [vmem:[%s281 + $0x30] sm:%s274]
                %290 = vst [vmem:[%s282 + $0x18] sm:%s274] %v289
                %v291 = vld [vmem:[%s281 + $0x40] sm:%s274]
                %292 = vst [vmem:[%s282 + $0x20] sm:%s274] %v291
                %v293 = vld [vmem:[%s281 + $0x50] sm:%s274]
                %294 = vst [vmem:[%s282 + $0x28] sm:%s274] %v293
                %v295 = vld [vmem:[%s281 + $0x60] sm:%s274]
                %296 = vst [vmem:[%s282 + $0x30] sm:%s274] %v295
                %v297 = vld [vmem:[%s281 + $0x70] sm:%s274]
                %298 = vst [vmem:[%s282 + $0x38] sm:%s274] %v297
              $region87: #{tpu_custom_call.1} parent=81 // loop_footer
                %s280 = sadd.s32 1, %s276
              $region88: #{tpu_custom_call.1} parent=81 // loop_footer_branch
                %275 = sbr.rel target = $region84
              $region89: #{tpu_custom_call.1} parent=81 // loop_exit
                _
            $region82: #{tpu_custom_call.1} parent=73 // pred_fallthru
              _
          $region74: #{tpu_custom_call.1} parent=69 // pred_fallthru
            _
          %327 = vnop
        $region70: #{tpu_custom_call.1} parent=27 // pred_fallthru
          _
      $region28: #{tpu_custom_call.1} parent=5 // pred_fallthru
        _
      %p328 = scmp.le.s32.totalorder 1, %s14
      %p329 = scmp.lt.s32.totalorder %s14, 3
      %p330 = pnand %p328, %p329
      %p331 = pneg %p330
      // Predicated region
      $region105: #{tpu_custom_call.1} parent=5 // pred_check
        _
      $region106: #{tpu_custom_call.1} parent=5 // pred_check_branch
        %333 = sbr.rel (%p330) target = $region108
      $region107: #{tpu_custom_call.1} parent=5 // pred_region
        %s334 = ssub.s32 %s14, 1
        %s335 = sand.u32 %s27, 1
        %s336 = sand.u32 %s27, 1
        %s337 = smul.addr %s336, 64
        %s338 = scalar_lea.vmem [#allocation2], %s337
        // Predicated region
        $region109: #{tpu_custom_call.1} parent=107 // pred_check
          %p339 = pneg %p40
        $region110: #{tpu_custom_call.1} parent=107 // pred_check_branch
          %341 = sbr.rel (%p339) target = $region112
        $region111: #{tpu_custom_call.1} parent=107 // pred_region
          _
        $region112: #{tpu_custom_call.1} parent=107 // pred_fallthru
          _
        %s342 = sand.u32 %s53, 1
        %s343 = sand.u32 %s53, 1
        %s344 = smul.addr %s343, 64
        %s345 = scalar_lea.vmem [#allocation3], %s344
        // Predicated region
        $region113: #{tpu_custom_call.1} parent=107 // pred_check
          %p346 = pneg %p66
        $region114: #{tpu_custom_call.1} parent=107 // pred_check_branch
          %348 = sbr.rel (%p346) target = $region116
        $region115: #{tpu_custom_call.1} parent=107 // pred_region
          _
        $region116: #{tpu_custom_call.1} parent=107 // pred_fallthru
          _
        %s349 = sand.u32 %s27, 1
        %s350 = sand.u32 %s27, 1
        %s351 = smul.addr %s350, 64
        %s352 = scalar_lea.vmem [#allocation2], %s351
        %p353 = pneg %p40
        %p354 = pneg %p37
        %s355 = sand.u32 %s53, 1
        %s356 = sand.u32 %s53, 1
        %s357 = smul.addr %s356, 64
        %s358 = scalar_lea.vmem [#allocation3], %s357
        %p359 = pneg %p66
        %p360 = pneg %p63
        %p361 = pneg %p87
        %p362 = pneg %p84
        %p363 = pneg %p108
        %p364 = pneg %p105
        %p365 = pneg %p129
        %p366 = pneg %p126
        %p367 = pneg %p155
        %p368 = pneg %p152
        %s369 = sand.u32 %s142, 1
        %s370 = scalar_lea.sflag [#allocation5], %s369
        %s371 = sand.u32 %s142, 1
        %s372 = smul.addr %s371, 64
        %s373 = scalar_lea.vmem [#allocation4], %s372
        %s374 = smul.u32 8, %s19
        %s375 = smul.u32 8, %s19
        %s376 = smul.u32 8, %s19
        %v377 = vld [vmem:[%s338] sm:$0xff]
        %v378 = vld [vmem:[%s338 + $0x8] sm:$0xff]
        %v379 = vld [vmem:[%s338 + $0x10] sm:$0xff]
        %v380 = vld [vmem:[%s338 + $0x18] sm:$0xff]
        %v381 = vld [vmem:[%s338 + $0x20] sm:$0xff]
        %v382 = vld [vmem:[%s338 + $0x28] sm:$0xff]
        %v383 = vld [vmem:[%s338 + $0x30] sm:$0xff]
        %v384 = vld [vmem:[%s338 + $0x38] sm:$0xff]
        %v385 = vld [vmem:[%s345] sm:$0xff]
        %v386 = vld [vmem:[%s345 + $0x8] sm:$0xff]
        %v387 = vld [vmem:[%s345 + $0x10] sm:$0xff]
        %v388 = vld [vmem:[%s345 + $0x18] sm:$0xff]
        %v389 = vld [vmem:[%s345 + $0x20] sm:$0xff]
        %v390 = vld [vmem:[%s345 + $0x28] sm:$0xff]
        %v391 = vld [vmem:[%s345 + $0x30] sm:$0xff]
        %v392 = vld [vmem:[%s345 + $0x38] sm:$0xff]
        %vm393 = vcmask 64512
        %v394 = vsel %vm393, %v377, 0.0
        %395 = vadd.xlane.f32.xlu0 %v394
        %v396 = vpop.xlane.xlu0 %395
        %v397 = vsel %vm393, %v378, 0.0
        %398 = vadd.xlane.f32.xlu0 %v397
        %v399 = vpop.xlane.xlu0 %398
        %v400 = vsel %vm393, %v379, 0.0
        %401 = vadd.xlane.f32.xlu0 %v400
        %v402 = vpop.xlane.xlu0 %401
        %v403 = vsel %vm393, %v380, 0.0
        %404 = vadd.xlane.f32.xlu0 %v403
        %v405 = vpop.xlane.xlu0 %404
        %v406 = vsel %vm393, %v381, 0.0
        %407 = vadd.xlane.f32.xlu0 %v406
        %v408 = vpop.xlane.xlu0 %407
        %v409 = vsel %vm393, %v382, 0.0
        %410 = vadd.xlane.f32.xlu0 %v409
        %v411 = vpop.xlane.xlu0 %410
        %v412 = vsel %vm393, %v383, 0.0
        %413 = vadd.xlane.f32.xlu0 %v412
        %v414 = vpop.xlane.xlu0 %413
        %v415 = vsel %vm393, %v384, 0.0
        %416 = vadd.xlane.f32.xlu0 %v415
        %v417 = vpop.xlane.xlu0 %416
        %v418 = vsel %vm393, %v385, 0.0
        %419 = vadd.xlane.f32.xlu0 %v418
        %v420 = vpop.xlane.xlu0 %419
        %v421 = vsel %vm393, %v386, 0.0
        %422 = vadd.xlane.f32.xlu0 %v421
        %v423 = vpop.xlane.xlu0 %422
        %v424 = vsel %vm393, %v387, 0.0
        %425 = vadd.xlane.f32.xlu0 %v424
        %v426 = vpop.xlane.xlu0 %425
        %v427 = vsel %vm393, %v388, 0.0
        %428 = vadd.xlane.f32.xlu0 %v427
        %v429 = vpop.xlane.xlu0 %428
        %v430 = vsel %vm393, %v389, 0.0
        %431 = vadd.xlane.f32.xlu0 %v430
        %v432 = vpop.xlane.xlu0 %431
        %v433 = vsel %vm393, %v390, 0.0
        %434 = vadd.xlane.f32.xlu0 %v433
        %v435 = vpop.xlane.xlu0 %434
        %v436 = vsel %vm393, %v391, 0.0
        %437 = vadd.xlane.f32.xlu0 %v436
        %v438 = vpop.xlane.xlu0 %437
        %v439 = vsel %vm393, %v392, 0.0
        %440 = vadd.xlane.f32.xlu0 %v439
        %v441 = vpop.xlane.xlu0 %440
        %v442 = vadd.f32 %v396, %v420
        %v443 = vadd.f32 %v399, %v423
        %v444 = vadd.f32 %v402, %v426
        %v445 = vadd.f32 %v405, %v429
        %v446 = vadd.f32 %v408, %v432
        %v447 = vadd.f32 %v411, %v435
        %v448 = vadd.f32 %v414, %v438
        %v449 = vadd.f32 %v417, %v441
        %v450 = vmul.f32 %v442, 0.0625
        %v451 = vmul.f32 %v443, 0.0625
        %v452 = vmul.f32 %v444, 0.0625
        %v453 = vmul.f32 %v445, 0.0625
        %v454 = vmul.f32 %v446, 0.0625
        %v455 = vmul.f32 %v447, 0.0625
        %v456 = vmul.f32 %v448, 0.0625
        %v457 = vmul.f32 %v449, 0.0625
        %v458 = vsub.f32 %v377, %v450
        %v459 = vsub.f32 %v378, %v451
        %v460 = vsub.f32 %v379, %v452
        %v461 = vsub.f32 %v380, %v453
        %v462 = vsub.f32 %v381, %v454
        %v463 = vsub.f32 %v382, %v455
        %v464 = vsub.f32 %v383, %v456
        %v465 = vsub.f32 %v384, %v457
        %v466 = vsub.f32 %v385, %v450
        %v467 = vsub.f32 %v386, %v451
        %v468 = vsub.f32 %v387, %v452
        %v469 = vsub.f32 %v388, %v453
        %v470 = vsub.f32 %v389, %v454
        %v471 = vsub.f32 %v390, %v455
        %v472 = vsub.f32 %v391, %v456
        %v473 = vsub.f32 %v392, %v457
        %v474 = vmul.f32 %v458, %v458
        %v475 = vmul.f32 %v459, %v459
        %v476 = vmul.f32 %v460, %v460
        %v477 = vmul.f32 %v461, %v461
        %v478 = vmul.f32 %v462, %v462
        %v479 = vmul.f32 %v463, %v463
        %v480 = vmul.f32 %v464, %v464
        %v481 = vmul.f32 %v465, %v465
        %v482 = vsel %vm393, %v474, 0.0
        %483 = vadd.xlane.f32.xlu0 %v482
        %v484 = vpop.xlane.xlu0 %483
        %v485 = vsel %vm393, %v475, 0.0
        %486 = vadd.xlane.f32.xlu0 %v485
        %v487 = vpop.xlane.xlu0 %486
        %v488 = vsel %vm393, %v476, 0.0
        %489 = vadd.xlane.f32.xlu0 %v488
        %v490 = vpop.xlane.xlu0 %489
        %v491 = vsel %vm393, %v477, 0.0
        %492 = vadd.xlane.f32.xlu0 %v491
        %v493 = vpop.xlane.xlu0 %492
        %v494 = vsel %vm393, %v478, 0.0
        %495 = vadd.xlane.f32.xlu0 %v494
        %v496 = vpop.xlane.xlu0 %495
        %v497 = vsel %vm393, %v479, 0.0
        %498 = vadd.xlane.f32.xlu0 %v497
        %v499 = vpop.xlane.xlu0 %498
        %v500 = vsel %vm393, %v480, 0.0
        %501 = vadd.xlane.f32.xlu0 %v500
        %v502 = vpop.xlane.xlu0 %501
        %v503 = vsel %vm393, %v481, 0.0
        %504 = vadd.xlane.f32.xlu0 %v503
        %v505 = vpop.xlane.xlu0 %504
        %v506 = vmul.f32 %v466, %v466
        %v507 = vmul.f32 %v467, %v467
        %v508 = vmul.f32 %v468, %v468
        %v509 = vmul.f32 %v469, %v469
        %v510 = vmul.f32 %v470, %v470
        %v511 = vmul.f32 %v471, %v471
        %v512 = vmul.f32 %v472, %v472
        %v513 = vmul.f32 %v473, %v473
        %v514 = vsel %vm393, %v506, 0.0
        %515 = vadd.xlane.f32.xlu0 %v514
        %v516 = vpop.xlane.xlu0 %515
        %v517 = vsel %vm393, %v507, 0.0
        %518 = vadd.xlane.f32.xlu0 %v517
        %v519 = vpop.xlane.xlu0 %518
        %v520 = vsel %vm393, %v508, 0.0
        %521 = vadd.xlane.f32.xlu0 %v520
        %v522 = vpop.xlane.xlu0 %521
        %v523 = vsel %vm393, %v509, 0.0
        %524 = vadd.xlane.f32.xlu0 %v523
        %v525 = vpop.xlane.xlu0 %524
        %v526 = vsel %vm393, %v510, 0.0
        %527 = vadd.xlane.f32.xlu0 %v526
        %v528 = vpop.xlane.xlu0 %527
        %v529 = vsel %vm393, %v511, 0.0
        %530 = vadd.xlane.f32.xlu0 %v529
        %v531 = vpop.xlane.xlu0 %530
        %v532 = vsel %vm393, %v512, 0.0
        %533 = vadd.xlane.f32.xlu0 %v532
        %v534 = vpop.xlane.xlu0 %533
        %v535 = vsel %vm393, %v513, 0.0
        %536 = vadd.xlane.f32.xlu0 %v535
        %v537 = vpop.xlane.xlu0 %536
        %v538 = vadd.f32 %v484, %v516
        %v539 = vadd.f32 %v487, %v519
        %v540 = vadd.f32 %v490, %v522
        %v541 = vadd.f32 %v493, %v525
        %v542 = vadd.f32 %v496, %v528
        %v543 = vadd.f32 %v499, %v531
        %v544 = vadd.f32 %v502, %v534
        %v545 = vadd.f32 %v505, %v537
        %v546 = vmul.f32 %v538, 0.0625
        %v547 = vmul.f32 %v539, 0.0625
        %v548 = vmul.f32 %v540, 0.0625
        %v549 = vmul.f32 %v541, 0.0625
        %v550 = vmul.f32 %v542, 0.0625
        %v551 = vmul.f32 %v543, 0.0625
        %v552 = vmul.f32 %v544, 0.0625
        %v553 = vmul.f32 %v545, 0.0625
        %v554 = vadd.f32 %v546, 1e-05
        %v555 = vadd.f32 %v547, 1e-05
        %v556 = vadd.f32 %v548, 1e-05
        %v557 = vadd.f32 %v549, 1e-05
        %v558 = vadd.f32 %v550, 1e-05
        %v559 = vadd.f32 %v551, 1e-05
        %v560 = vadd.f32 %v552, 1e-05
        %v561 = vadd.f32 %v553, 1e-05
        %v562 = vrsqrt.pop %v554
        %v563 = vmul.f32 %v562, %v554
        %v564 = vmul.f32 %v563, %v562
        %v565 = vmul.f32 0.5, %v564
        %v566 = vsub.f32 1.5, %v565
        %v567 = vmul.f32 %v562, %v566
        %vm568 = vweird.f32 %v554
        %vm569 = vweird.f32 %v562
        %vm570 = vmor %vm568, %vm569
        %v571 = vsel %vm570, %v562, %v567
        %v572 = vrsqrt.pop %v555
        %v573 = vmul.f32 %v572, %v555
        %v574 = vmul.f32 %v573, %v572
        %v575 = vmul.f32 0.5, %v574
        %v576 = vsub.f32 1.5, %v575
        %v577 = vmul.f32 %v572, %v576
        %vm578 = vweird.f32 %v555
        %vm579 = vweird.f32 %v572
        %vm580 = vmor %vm578, %vm579
        %v581 = vsel %vm580, %v572, %v577
        %v582 = vrsqrt.pop %v556
        %v583 = vmul.f32 %v582, %v556
        %v584 = vmul.f32 %v583, %v582
        %v585 = vmul.f32 0.5, %v584
        %v586 = vsub.f32 1.5, %v585
        %v587 = vmul.f32 %v582, %v586
        %vm588 = vweird.f32 %v556
        %vm589 = vweird.f32 %v582
        %vm590 = vmor %vm588, %vm589
        %v591 = vsel %vm590, %v582, %v587
        %v592 = vrsqrt.pop %v557
        %v593 = vmul.f32 %v592, %v557
        %v594 = vmul.f32 %v593, %v592
        %v595 = vmul.f32 0.5, %v594
        %v596 = vsub.f32 1.5, %v595
        %v597 = vmul.f32 %v592, %v596
        %vm598 = vweird.f32 %v557
        %vm599 = vweird.f32 %v592
        %vm600 = vmor %vm598, %vm599
        %v601 = vsel %vm600, %v592, %v597
        %v602 = vrsqrt.pop %v558
        %v603 = vmul.f32 %v602, %v558
        %v604 = vmul.f32 %v603, %v602
        %v605 = vmul.f32 0.5, %v604
        %v606 = vsub.f32 1.5, %v605
        %v607 = vmul.f32 %v602, %v606
        %vm608 = vweird.f32 %v558
        %vm609 = vweird.f32 %v602
        %vm610 = vmor %vm608, %vm609
        %v611 = vsel %vm610, %v602, %v607
        %v612 = vrsqrt.pop %v559
        %v613 = vmul.f32 %v612, %v559
        %v614 = vmul.f32 %v613, %v612
        %v615 = vmul.f32 0.5, %v614
        %v616 = vsub.f32 1.5, %v615
        %v617 = vmul.f32 %v612, %v616
        %vm618 = vweird.f32 %v559
        %vm619 = vweird.f32 %v612
        %vm620 = vmor %vm618, %vm619
        %v621 = vsel %vm620, %v612, %v617
        %v622 = vrsqrt.pop %v560
        %v623 = vmul.f32 %v622, %v560
        %v624 = vmul.f32 %v623, %v622
        %v625 = vmul.f32 0.5, %v624
        %v626 = vsub.f32 1.5, %v625
        %v627 = vmul.f32 %v622, %v626
        %vm628 = vweird.f32 %v560
        %vm629 = vweird.f32 %v622
        %vm630 = vmor %vm628, %vm629
        %v631 = vsel %vm630, %v622, %v627
        %v632 = vrsqrt.pop %v561
        %v633 = vmul.f32 %v632, %v561
        %v634 = vmul.f32 %v633, %v632
        %v635 = vmul.f32 0.5, %v634
        %v636 = vsub.f32 1.5, %v635
        %v637 = vmul.f32 %v632, %v636
        %vm638 = vweird.f32 %v561
        %vm639 = vweird.f32 %v632
        %vm640 = vmor %vm638, %vm639
        %v641 = vsel %vm640, %v632, %v637
        %v642 = vmul.f32 %v458, %v571
        %v643 = vmul.f32 %v459, %v581
        %v644 = vmul.f32 %v460, %v591
        %v645 = vmul.f32 %v461, %v601
        %v646 = vmul.f32 %v462, %v611
        %v647 = vmul.f32 %v463, %v621
        %v648 = vmul.f32 %v464, %v631
        %v649 = vmul.f32 %v465, %v641
        %v650 = vld [vmem:[%s2] sm:$0x1]
        %v652 = vperm.slane %v650, 0
        %v654 = vmul.f32 %v642, %v652
        %v655 = vmul.f32 %v643, %v652
        %v656 = vmul.f32 %v644, %v652
        %v657 = vmul.f32 %v645, %v652
        %v658 = vmul.f32 %v646, %v652
        %v659 = vmul.f32 %v647, %v652
        %v660 = vmul.f32 %v648, %v652
        %v661 = vmul.f32 %v649, %v652
        %v662 = vld [vmem:[%s3] sm:$0x1]
        %v664 = vperm.slane %v662, 0
        %v666 = vadd.f32 %v654, %v664
        %v667 = vadd.f32 %v655, %v664
        %v668 = vadd.f32 %v656, %v664
        %v669 = vadd.f32 %v657, %v664
        %v670 = vadd.f32 %v658, %v664
        %v671 = vadd.f32 %v659, %v664
        %v672 = vadd.f32 %v660, %v664
        %v673 = vadd.f32 %v661, %v664
        %v674 = vmul.f32 %v466, %v571
        %v675 = vmul.f32 %v467, %v581
        %v676 = vmul.f32 %v468, %v591
        %v677 = vmul.f32 %v469, %v601
        %v678 = vmul.f32 %v470, %v611
        %v679 = vmul.f32 %v471, %v621
        %v680 = vmul.f32 %v472, %v631
        %v681 = vmul.f32 %v473, %v641
        %s682 = scalar_lea.vmem %s2, 1
        %v683 = vld [vmem:[%s682] sm:$0x1]
        %v685 = vperm.slane %v683, 0
        %v687 = vmul.f32 %v674, %v685
        %v688 = vmul.f32 %v675, %v685
        %v689 = vmul.f32 %v676, %v685
        %v690 = vmul.f32 %v677, %v685
        %v691 = vmul.f32 %v678, %v685
        %v692 = vmul.f32 %v679, %v685
        %v693 = vmul.f32 %v680, %v685
        %v694 = vmul.f32 %v681, %v685
        %s695 = scalar_lea.vmem %s3, 1
        %v696 = vld [vmem:[%s695] sm:$0x1]
        %v698 = vperm.slane %v696, 0
        %v700 = vadd.f32 %v687, %v698
        %v701 = vadd.f32 %v688, %v698
        %v702 = vadd.f32 %v689, %v698
        %v703 = vadd.f32 %v690, %v698
        %v704 = vadd.f32 %v691, %v698
        %v705 = vadd.f32 %v692, %v698
        %v706 = vadd.f32 %v693, %v698
        %v707 = vadd.f32 %v694, %v698
        %v708 = vld [vmem:[%s4] sm:$0xff]
        %s709 = scalar_lea.vmem %s4, 8
        %v710 = vld [vmem:[%s709] sm:$0xff]
        %v712 = vsel %vm393, %v700, 0
        %v715 = vsel %vm393, %v701, 0
        %v718 = vsel %vm393, %v702, 0
        %v721 = vsel %vm393, %v703, 0
        %v724 = vsel %vm393, %v704, 0
        %v727 = vsel %vm393, %v705, 0
        %v730 = vsel %vm393, %v706, 0
        %v733 = vsel %vm393, %v707, 0
        %735 = vmatpush.msra.mxu0 0.0
        %736 = vmatpush.msra.mxu0 0.0
        %737 = vmatpush.msra.mxu0 0.0
        %738 = vmatpush.msra.mxu0 0.0
        %739 = vmatpush.msra.mxu0 0.0
        %740 = vmatpush.msra.mxu0 0.0
        %741 = vmatpush.msra.mxu0 0.0
        %742 = vmatpush.msra.mxu0 0.0
        %743 = vmatpush.msra.mxu0 0.0
        %744 = vmatpush.msra.mxu0 0.0
        %745 = vmatpush.msra.mxu0 0.0
        %746 = vmatpush.msra.mxu0 0.0
        %747 = vmatpush.msra.mxu0 0.0
        %748 = vmatpush.msra.mxu0 0.0
        %749 = vmatpush.msra.mxu0 0.0
        %750 = vmatpush.msra.mxu0 %v710
        %751 = vmatmul.f32.gmra.mxu0 %v712
        %v752 = vpop.f32.mrf.mxu0
        %v753 = vadd.f32 0.0, %v752
        %754 = vmatmul.f32.gmra.mxu0 %v715
        %v755 = vpop.f32.mrf.mxu0
        %v756 = vadd.f32 0.0, %v755
        %757 = vmatmul.f32.gmra.mxu0 %v718
        %v758 = vpop.f32.mrf.mxu0
        %v759 = vadd.f32 0.0, %v758
        %760 = vmatmul.f32.gmra.mxu0 %v721
        %v761 = vpop.f32.mrf.mxu0
        %v762 = vadd.f32 0.0, %v761
        %763 = vmatmul.f32.gmra.mxu0 %v724
        %v764 = vpop.f32.mrf.mxu0
        %v765 = vadd.f32 0.0, %v764
        %766 = vmatmul.f32.gmra.mxu0 %v727
        %v767 = vpop.f32.mrf.mxu0
        %v768 = vadd.f32 0.0, %v767
        %769 = vmatmul.f32.gmra.mxu0 %v730
        %v770 = vpop.f32.mrf.mxu0
        %v771 = vadd.f32 0.0, %v770
        %772 = vmatmul.f32.gmra.mxu0 %v733
        %v773 = vpop.f32.mrf.mxu0
        %v774 = vadd.f32 0.0, %v773
        %775 = vdwg.mxu0
        %v777 = vsel %vm393, %v666, 0
        %v780 = vsel %vm393, %v667, 0
        %v783 = vsel %vm393, %v668, 0
        %v786 = vsel %vm393, %v669, 0
        %v789 = vsel %vm393, %v670, 0
        %v792 = vsel %vm393, %v671, 0
        %v795 = vsel %vm393, %v672, 0
        %v798 = vsel %vm393, %v673, 0
        %800 = vmatpush.msra.mxu0 0.0
        %801 = vmatpush.msra.mxu0 0.0
        %802 = vmatpush.msra.mxu0 0.0
        %803 = vmatpush.msra.mxu0 0.0
        %804 = vmatpush.msra.mxu0 0.0
        %805 = vmatpush.msra.mxu0 0.0
        %806 = vmatpush.msra.mxu0 0.0
        %807 = vmatpush.msra.mxu0 0.0
        %808 = vmatpush.msra.mxu0 0.0
        %809 = vmatpush.msra.mxu0 0.0
        %810 = vmatpush.msra.mxu0 0.0
        %811 = vmatpush.msra.mxu0 0.0
        %812 = vmatpush.msra.mxu0 0.0
        %813 = vmatpush.msra.mxu0 0.0
        %814 = vmatpush.msra.mxu0 0.0
        %815 = vmatpush.msra.mxu0 %v708
        %816 = vmatmul.f32.gmra.mxu0 %v777
        %v817 = vpop.f32.mrf.mxu0
        %v818 = vadd.f32 %v753, %v817
        %819 = vmatmul.f32.gmra.mxu0 %v780
        %v820 = vpop.f32.mrf.mxu0
        %v821 = vadd.f32 %v756, %v820
        %822 = vmatmul.f32.gmra.mxu0 %v783
        %v823 = vpop.f32.mrf.mxu0
        %v824 = vadd.f32 %v759, %v823
        %825 = vmatmul.f32.gmra.mxu0 %v786
        %v826 = vpop.f32.mrf.mxu0
        %v827 = vadd.f32 %v762, %v826
        %828 = vmatmul.f32.gmra.mxu0 %v789
        %v829 = vpop.f32.mrf.mxu0
        %v830 = vadd.f32 %v765, %v829
        %831 = vmatmul.f32.gmra.mxu0 %v792
        %v832 = vpop.f32.mrf.mxu0
        %v833 = vadd.f32 %v768, %v832
        %834 = vmatmul.f32.gmra.mxu0 %v795
        %v835 = vpop.f32.mrf.mxu0
        %v836 = vadd.f32 %v771, %v835
        %837 = vmatmul.f32.gmra.mxu0 %v798
        %v838 = vpop.f32.mrf.mxu0
        %v839 = vadd.f32 %v774, %v838
        %840 = vdwg.mxu0
        %841 = vst [vmem:[%s373] sm:$0xff] %v818
        %842 = vst [vmem:[%s373 + $0x8] sm:$0xff] %v821
        %843 = vst [vmem:[%s373 + $0x10] sm:$0xff] %v824
        %844 = vst [vmem:[%s373 + $0x18] sm:$0xff] %v827
        %845 = vst [vmem:[%s373 + $0x20] sm:$0xff] %v830
        %846 = vst [vmem:[%s373 + $0x28] sm:$0xff] %v833
        %847 = vst [vmem:[%s373 + $0x30] sm:$0xff] %v836
        %848 = vst [vmem:[%s373 + $0x38] sm:$0xff] %v839
        %s849 = sand.u32 %s142, 1
        %s850 = scalar_lea.sflag [#allocation5], %s849
        %s851 = sand.u32 %s142, 1
        %s852 = smul.addr %s851, 64
        %s853 = scalar_lea.vmem [#allocation4], %s852
        // Predicated region
        $region117: #{tpu_custom_call.1} parent=107 // pred_check
          %p854 = pneg %p152
        $region118: #{tpu_custom_call.1} parent=107 // pred_check_branch
          %856 = sbr.rel (%p854) target = $region120
        $region119: #{tpu_custom_call.1} parent=107 // pred_region
          %s857 = smul.u32 8, %s19
          %859 = vsyncadd %s850, 0
          %s860 = smul.addr %s857, 8
          %s861 = scalar_lea.hbm %s5, %s860
          %s862 = sshll.u32 %s853, 4
          %s863 = int_to_ptr.vmem [resolvable:$true] %s862
          %s864 = sshll.u32 %s861, 4
          %s865 = int_to_ptr.hbm [resolvable:$true] %s864
          %870 = dma.vmem_to_hbm [thread:$0]  %s863, 1024, %s865, %s850, 128, 128, 8
        $region120: #{tpu_custom_call.1} parent=107 // pred_fallthru
          _
      $region108: #{tpu_custom_call.1} parent=5 // pred_fallthru
        _
      %p871 = scmp.le.s32.totalorder 2, %s14
      // Predicated region
      $region121: #{tpu_custom_call.1} parent=5 // pred_check
        %p872 = pneg %p871
      $region122: #{tpu_custom_call.1} parent=5 // pred_check_branch
        %874 = sbr.rel (%p872) target = $region124
      $region123: #{tpu_custom_call.1} parent=5 // pred_region
        %s875 = ssub.s32 %s14, 2
        // Predicated region
        $region125: #{tpu_custom_call.1} parent=123 // pred_check
          %p876 = pneg %p158
        $region126: #{tpu_custom_call.1} parent=123 // pred_check_branch
          %878 = sbr.rel (%p876) target = $region128
        $region127: #{tpu_custom_call.1} parent=123 // pred_region
          %s879 = sand.u32 %s143, 1
          %s880 = scalar_lea.sflag [#allocation5], %s879
          %s881 = sand.u32 %s143, 1
          %s882 = smul.addr %s881, 64
          %s883 = scalar_lea.vmem [#allocation4], %s882
          %885 = dma.done %s880, 1024
        $region128: #{tpu_custom_call.1} parent=123 // pred_fallthru
          _
      $region124: #{tpu_custom_call.1} parent=5 // pred_fallthru
        _
    $region6: #{tpu_custom_call.1} parent=1 // loop_footer
      %s18 = sadd.s32 1, %s14
    $region7: #{tpu_custom_call.1} parent=1 // loop_footer_branch
      %13 = sbr.rel target = $region3
    $region8: #{tpu_custom_call.1} parent=1 // loop_exit
      _
    %886 = vsyncpa [#allocation5], 1
    %s887 = scalar_lea.sflag [#allocation5], 1
    %888 = vsyncpa %s887, 1

</llo_original>
